<compile_context>
chip_gen: v6e
topology: v6e:2x2x1
jax: 0.10.0
libtpu: 0.0.40
codegen_flags: <defaults>
</compile_context>

<pallas_src>
import functools

import jax
import jax.numpy as jnp
from jax.experimental import pallas as pl
from jax.experimental.pallas import tpu as pltpu


def _round_up(n: int, m: int) -> int:
    return ((n + m - 1) // m) * m


_SQRT_2_OVER_PI = 0.7978845608028654


def _gelu_tanh(x):
    # TODO(synk): PyTorch nn.GELU() defaults to the exact erf formulation; the
    # tanh approximation is used here (and in the in-script reference).
    return 0.5 * x * (1.0 + jnp.tanh(_SQRT_2_OVER_PI * (x + 0.044715 * x * x * x)))


# ----------------------------- depthwise 3x3 conv ----------------------------

def _dwconv3x3_kernel(x_ref, wb_ref, o_ref):
    # x_ref : (1, C, Hp, Wp) zero-padded input; valid data at [:, 1:H+1, 1:W+1]
    # wb_ref: (C, 10)        columns 0..8 = 3x3 taps (row-major), column 9 = bias
    # o_ref : (1, C, H, W)
    _, C, H, W = o_ref.shape
    x = x_ref[0].astype(jnp.float32)              # (C, Hp, Wp)
    wb = wb_ref[...].astype(jnp.float32)          # (C, 10)

    acc = jnp.zeros((C, H, W), jnp.float32)
    for p in range(3):
        for q in range(3):
            k = 3 * p + q
            tap = wb[:, k:k + 1][..., None]       # (C, 1, 1)
            # output (i, j) <- padded input (i + p, j + q)
            #               == original input (i + p - 1, j + q - 1)
            acc = acc + tap * x[:, p:p + H, q:q + W]
    acc = acc + wb[:, 9:10][..., None]            # bias
    o_ref[0] = acc.astype(o_ref.dtype)


def depthwise_conv3x3(x, w, b):
    """x: (B, C, H, W); w: (C, 1, 3, 3) (PyTorch layout); b: (C,)."""
    B, C, H, W = x.shape
    Hp = _round_up(H + 2, 8)        # sublane-aligned padded height (>= H + 2)
    Wp = _round_up(W + 2, 128)      # lane-aligned padded width  (>= W + 2)
    xp = jnp.pad(x, ((0, 0), (0, 0), (1, Hp - H - 1), (1, Wp - W - 1)))
    wb = jnp.concatenate([w.reshape(C, 9), b.reshape(C, 1)], axis=1)  # (C, 10)

    # NOTE: one full (padded) sample per grid step; fine for neck-style H, W.
    # Very large spatial extents would tile H here with a 1-row halo.
    return pl.pallas_call(
        _dwconv3x3_kernel,
        out_shape=jax.ShapeDtypeStruct((B, C, H, W), x.dtype),
        grid=(B,),
        in_specs=[
            pl.BlockSpec((1, C, Hp, Wp), lambda i: (i, 0, 0, 0)),
            pl.BlockSpec((C, 10), lambda i: (0, 0)),
        ],
        out_specs=pl.BlockSpec((1, C, H, W), lambda i: (i, 0, 0, 0)),
        compiler_params=pltpu.CompilerParams(
            dimension_semantics=("parallel",)),
    )(xp, wb)


# ------ fused LayerNorm2d + pw-conv1 + GELU + pw-conv2 + scale + residual ----

def _convblock_tail_kernel(xd_ref, x_ref, ln_ref, w1_ref, w2_ref, wr_ref,
                           cvec_ref, o_ref, *, eps: float):
    # xd_ref : (1, Cin, T)   depthwise-conv output tile
    # x_ref  : (1, Cin, T)   original-input tile (for the residual 1x1 conv)
    # ln_ref : (Cin, 2)      [:, 0] = LayerNorm weight, [:, 1] = LayerNorm bias
    # w1_ref : (Cout, Cin)   pointwise_conv1 weight
    # w2_ref : (Cout, Cout)  pointwise_conv2 weight
    # wr_ref : (Cout, Cin)   residual_conv weight
    # cvec_ref: (Cout, 4)    [b1 | b2 | layer_scale | residual bias]
    # o_ref  : (1, Cout, T)
    f32 = jnp.float32
    xd = xd_ref[0].astype(f32)                      # (Cin, T)
    xin = x_ref[0].astype(f32)                      # (Cin, T)

    # LayerNorm2d: per-pixel (lane) reduction over channels (sublane axis).
    u = jnp.mean(xd, axis=0, keepdims=True)         # (1, T)
    d = xd - u
    var = jnp.mean(d * d, axis=0, keepdims=True)    # (1, T)
    inv = jax.lax.rsqrt(var + eps)                  # (1, T)
    gamma = ln_ref[:, 0:1].astype(f32)              # (Cin, 1)
    beta = ln_ref[:, 1:2].astype(f32)               # (Cin, 1)
    y = d * (gamma * inv) + beta                    # reassociated affine

    cvec = cvec_ref[...].astype(f32)                # (Cout, 4)
    b1, b2, ls, br = cvec[:, 0:1], cvec[:, 1:2], cvec[:, 2:3], cvec[:, 3:4]

    # pointwise_conv1 + GELU.
    h = jnp.dot(w1_ref[...].astype(f32), y, preferred_element_type=f32) + b1
    h = _gelu_tanh(h)

    # pointwise_conv2 + layer_scale.
    z = jnp.dot(w2_ref[...].astype(f32), h, preferred_element_type=f32) + b2
    z = ls * z

    # drop_path (nn.Dropout2d(p=0.1)): identity in inference mode.
    # TODO(synk): training-mode channel dropout (pltpu.prng_*) not implemented.

    # residual 1x1 conv on the original input, then add.
    r = jnp.dot(wr_ref[...].astype(f32), xin, preferred_element_type=f32) + br
    o_ref[0] = (z + r).astype(o_ref.dtype)


def conv_block_forward(x, params, eps: float = 1e-6):
    """ConvBlock forward. x: (B, Cin, H, W) -> (B, Cout, H, W)."""
    B, Cin, H, W = x.shape
    Cout = params["w1"].shape[0]
    HW = H * W

    # (1) depthwise 3x3 conv (needs 2-D spatial structure).
    xd = depthwise_conv3x3(x, params["dw_w"], params["dw_b"])

    # (2) the rest is per-pixel: flatten HW and tile it lane-dense.
    LANE = 128
    # Cap the tile so the fp32 working set (a handful of (C, T) temporaries
    # plus double-buffered I/O blocks) stays well inside every generation's
    # scoped-VMEM default (v5e 16 MiB, v6e/v7x 32 MiB; v7x has 64 MiB total).
    rows = 4 * Cin + 4 * Cout
    cap = max(LANE, ((8 * 1024 * 1024) // (4 * rows)) // LANE * LANE)
    tile = min(1024, cap, _round_up(HW, LANE))
    HWp = _round_up(HW, tile)
    num_tiles = HWp // tile

    def _flat_pad(a):
        a = a.reshape(B, a.shape[1], HW)
        if HWp != HW:
            a = jnp.pad(a, ((0, 0), (0, 0), (0, HWp - HW)))
        return a

    xd_f = _flat_pad(xd)
    x_f = _flat_pad(x)

    ln = jnp.stack([params["gamma"], params["beta"]], axis=1)          # (Cin, 2)
    cvec = jnp.stack([params["b1"], params["b2"],
                      params["scale"], params["br"]], axis=1)          # (Cout, 4)

    kernel = functools.partial(_convblock_tail_kernel, eps=eps)
    out_f = pl.pallas_call(
        kernel,
        out_shape=jax.ShapeDtypeStruct((B, Cout, HWp), x.dtype),
        grid=(B, num_tiles),
        in_specs=[
            pl.BlockSpec((1, Cin, tile), lambda b, s: (b, 0, s)),
            pl.BlockSpec((1, Cin, tile), lambda b, s: (b, 0, s)),
            pl.BlockSpec((Cin, 2), lambda b, s: (0, 0)),
            pl.BlockSpec((Cout, Cin), lambda b, s: (0, 0)),
            pl.BlockSpec((Cout, Cout), lambda b, s: (0, 0)),
            pl.BlockSpec((Cout, Cin), lambda b, s: (0, 0)),
            pl.BlockSpec((Cout, 4), lambda b, s: (0, 0)),
        ],
        out_specs=pl.BlockSpec((1, Cout, tile), lambda b, s: (b, 0, s)),
        compiler_params=pltpu.CompilerParams(
            dimension_semantics=("parallel", "parallel")),
    )(xd_f, x_f, ln, params["w1"], params["w2"], params["wr"], cvec)

    return out_f[:, :, :HW].reshape(B, Cout, H, W)


# --------------------------------- reference ---------------------------------

def reference_conv_block(x, p, eps: float = 1e-6):
    hi = jax.lax.Precision.HIGHEST
    Cin = x.shape[1]
    res = jnp.einsum("oc,bchw->bohw", p["wr"], x, precision=hi)
    res = res + p["br"][None, :, None, None]
    xd = jax.lax.conv_general_dilated(
        x, p["dw_w"], window_strides=(1, 1), padding=((1, 1), (1, 1)),
        dimension_numbers=("NCHW", "OIHW", "NCHW"),
        feature_group_count=Cin, precision=hi)
    xd = xd + p["dw_b"][None, :, None, None]
    u = xd.mean(axis=1, keepdims=True)
    s = ((xd - u) ** 2).mean(axis=1, keepdims=True)
    xn = (xd - u) / jnp.sqrt(s + eps)
    xn = p["gamma"][None, :, None, None] * xn + p["beta"][None, :, None, None]
    h = jnp.einsum("oc,bchw->bohw", p["w1"], xn, precision=hi)
    h = _gelu_tanh(h + p["b1"][None, :, None, None])
    z = jnp.einsum("oc,bchw->bohw", p["w2"], h, precision=hi)
    z = z + p["b2"][None, :, None, None]
    z = p["scale"][None, :, None, None] * z
    return z + res          # drop_path is identity in inference mode


if __name__ == "__main__":
    B, Cin, Cout, H, W = 2, 4, 8, 16, 16
    key = jax.random.PRNGKey(0)
    ks = jax.random.split(key, 12)
    x = jax.random.normal(ks[0], (B, Cin, H, W), dtype=jnp.float32)
    params = {
        "dw_w": 0.2 * jax.random.normal(ks[1], (Cin, 1, 3, 3), jnp.float32),
        "dw_b": 0.1 * jax.random.normal(ks[2], (Cin,), jnp.float32),
        "gamma": 1.0 + 0.1 * jax.random.normal(ks[3], (Cin,), jnp.float32),
        "beta": 0.1 * jax.random.normal(ks[4], (Cin,), jnp.float32),
        "w1": 0.2 * jax.random.normal(ks[5], (Cout, Cin), jnp.float32),
        "b1": 0.1 * jax.random.normal(ks[6], (Cout,), jnp.float32),
        "w2": 0.2 * jax.random.normal(ks[7], (Cout, Cout), jnp.float32),
        "b2": 0.1 * jax.random.normal(ks[8], (Cout,), jnp.float32),
        "scale": 1.0 + 0.1 * jax.random.normal(ks[9], (Cout,), jnp.float32),
        "wr": 0.2 * jax.random.normal(ks[10], (Cout, Cin), jnp.float32),
        "br": 0.1 * jax.random.normal(ks[11], (Cout,), jnp.float32),
    }

    fwd = jax.jit(lambda xx, pp: conv_block_forward(xx, pp, eps=1e-6))
    out = jax.block_until_ready(fwd(x, params))

    ref = reference_conv_block(x, params, eps=1e-6)
    assert out.shape == (B, Cout, H, W)
    err = float(jnp.max(jnp.abs(out - ref)))
    assert err < 2e-3, f"max abs error vs reference: {err}"
    print("KERNEL_OK")
</pallas_src>

<mosaic_0001>
module attributes {stable_mosaic.version = 11 : i64} {
  func.func @_dwconv3x3_kernel(%arg0: i32, %arg1: memref<1x4x24x128xf32, #tpu.memory_space<vmem>>, %arg2: memref<4x10xf32, #tpu.memory_space<vmem>>, %arg3: memref<1x4x16x16xf32, #tpu.memory_space<vmem>>) attributes {dimension_semantics = [#tpu.dimension_semantics<parallel>], iteration_bounds = array<i64: 2>, scalar_prefetch = 0 : i64, scratch_operands = 0 : i64, tpu.core_type = #tpu.core_type<tc>, window_params = [{transform_indices = @transform_0, window_bounds = array<i64: 1, 4, 24, 128>}, {pipeline_mode = #tpu.pipeline_mode<synchronous>, transform_indices = @transform_1, window_bounds = array<i64: 4, 10>}, {transform_indices = @transform_2, window_bounds = array<i64: 1, 4, 16, 16>}]} {
    %c0 = arith.constant 0 : index
    %c0_0 = arith.constant 0 : index
    %c0_1 = arith.constant 0 : index
    %c0_2 = arith.constant 0 : index
    %0 = vector.load %arg1[%c0, %c0_0, %c0_1, %c0_2] : memref<1x4x24x128xf32, #tpu.memory_space<vmem>>, vector<1x4x24x128xf32>
    %1 = vector.shape_cast %0 : vector<1x4x24x128xf32> to vector<4x24x128xf32>
    %c0_3 = arith.constant 0 : index
    %c0_4 = arith.constant 0 : index
    %2 = vector.load %arg2[%c0_3, %c0_4] : memref<4x10xf32, #tpu.memory_space<vmem>>, vector<4x10xf32>
    %cst = arith.constant 0.000000e+00 : f32
    %3 = vector.broadcast %cst : f32 to vector<4x16x16xf32>
    %4 = vector.extract_strided_slice %2 {offsets = [0, 0], sizes = [4, 1], strides = [1, 1]} : vector<4x10xf32> to vector<4x1xf32>
    %5 = vector.shape_cast %4 : vector<4x1xf32> to vector<4x1x1xf32>
    %6 = vector.extract_strided_slice %1 {offsets = [0, 0, 0], sizes = [4, 16, 16], strides = [1, 1, 1]} : vector<4x24x128xf32> to vector<4x16x16xf32>
    %7 = vector.broadcast %5 : vector<4x1x1xf32> to vector<4x16x16xf32>
    %8 = arith.mulf %7, %6 : vector<4x16x16xf32>
    %9 = arith.addf %3, %8 : vector<4x16x16xf32>
    %10 = vector.extract_strided_slice %2 {offsets = [0, 1], sizes = [4, 1], strides = [1, 1]} : vector<4x10xf32> to vector<4x1xf32>
    %11 = vector.shape_cast %10 : vector<4x1xf32> to vector<4x1x1xf32>
    %12 = vector.extract_strided_slice %1 {offsets = [0, 0, 1], sizes = [4, 16, 16], strides = [1, 1, 1]} : vector<4x24x128xf32> to vector<4x16x16xf32>
    %13 = vector.broadcast %11 : vector<4x1x1xf32> to vector<4x16x16xf32>
    %14 = arith.mulf %13, %12 : vector<4x16x16xf32>
    %15 = arith.addf %9, %14 : vector<4x16x16xf32>
    %16 = vector.extract_strided_slice %2 {offsets = [0, 2], sizes = [4, 1], strides = [1, 1]} : vector<4x10xf32> to vector<4x1xf32>
    %17 = vector.shape_cast %16 : vector<4x1xf32> to vector<4x1x1xf32>
    %18 = vector.extract_strided_slice %1 {offsets = [0, 0, 2], sizes = [4, 16, 16], strides = [1, 1, 1]} : vector<4x24x128xf32> to vector<4x16x16xf32>
    %19 = vector.broadcast %17 : vector<4x1x1xf32> to vector<4x16x16xf32>
    %20 = arith.mulf %19, %18 : vector<4x16x16xf32>
    %21 = arith.addf %15, %20 : vector<4x16x16xf32>
    %22 = vector.extract_strided_slice %2 {offsets = [0, 3], sizes = [4, 1], strides = [1, 1]} : vector<4x10xf32> to vector<4x1xf32>
    %23 = vector.shape_cast %22 : vector<4x1xf32> to vector<4x1x1xf32>
    %24 = vector.extract_strided_slice %1 {offsets = [0, 1, 0], sizes = [4, 16, 16], strides = [1, 1, 1]} : vector<4x24x128xf32> to vector<4x16x16xf32>
    %25 = vector.broadcast %23 : vector<4x1x1xf32> to vector<4x16x16xf32>
    %26 = arith.mulf %25, %24 : vector<4x16x16xf32>
    %27 = arith.addf %21, %26 : vector<4x16x16xf32>
    %28 = vector.extract_strided_slice %2 {offsets = [0, 4], sizes = [4, 1], strides = [1, 1]} : vector<4x10xf32> to vector<4x1xf32>
    %29 = vector.shape_cast %28 : vector<4x1xf32> to vector<4x1x1xf32>
    %30 = vector.extract_strided_slice %1 {offsets = [0, 1, 1], sizes = [4, 16, 16], strides = [1, 1, 1]} : vector<4x24x128xf32> to vector<4x16x16xf32>
    %31 = vector.broadcast %29 : vector<4x1x1xf32> to vector<4x16x16xf32>
    %32 = arith.mulf %31, %30 : vector<4x16x16xf32>
    %33 = arith.addf %27, %32 : vector<4x16x16xf32>
    %34 = vector.extract_strided_slice %2 {offsets = [0, 5], sizes = [4, 1], strides = [1, 1]} : vector<4x10xf32> to vector<4x1xf32>
    %35 = vector.shape_cast %34 : vector<4x1xf32> to vector<4x1x1xf32>
    %36 = vector.extract_strided_slice %1 {offsets = [0, 1, 2], sizes = [4, 16, 16], strides = [1, 1, 1]} : vector<4x24x128xf32> to vector<4x16x16xf32>
    %37 = vector.broadcast %35 : vector<4x1x1xf32> to vector<4x16x16xf32>
    %38 = arith.mulf %37, %36 : vector<4x16x16xf32>
    %39 = arith.addf %33, %38 : vector<4x16x16xf32>
    %40 = vector.extract_strided_slice %2 {offsets = [0, 6], sizes = [4, 1], strides = [1, 1]} : vector<4x10xf32> to vector<4x1xf32>
    %41 = vector.shape_cast %40 : vector<4x1xf32> to vector<4x1x1xf32>
    %42 = vector.extract_strided_slice %1 {offsets = [0, 2, 0], sizes = [4, 16, 16], strides = [1, 1, 1]} : vector<4x24x128xf32> to vector<4x16x16xf32>
    %43 = vector.broadcast %41 : vector<4x1x1xf32> to vector<4x16x16xf32>
    %44 = arith.mulf %43, %42 : vector<4x16x16xf32>
    %45 = arith.addf %39, %44 : vector<4x16x16xf32>
    %46 = vector.extract_strided_slice %2 {offsets = [0, 7], sizes = [4, 1], strides = [1, 1]} : vector<4x10xf32> to vector<4x1xf32>
    %47 = vector.shape_cast %46 : vector<4x1xf32> to vector<4x1x1xf32>
    %48 = vector.extract_strided_slice %1 {offsets = [0, 2, 1], sizes = [4, 16, 16], strides = [1, 1, 1]} : vector<4x24x128xf32> to vector<4x16x16xf32>
    %49 = vector.broadcast %47 : vector<4x1x1xf32> to vector<4x16x16xf32>
    %50 = arith.mulf %49, %48 : vector<4x16x16xf32>
    %51 = arith.addf %45, %50 : vector<4x16x16xf32>
    %52 = vector.extract_strided_slice %2 {offsets = [0, 8], sizes = [4, 1], strides = [1, 1]} : vector<4x10xf32> to vector<4x1xf32>
    %53 = vector.shape_cast %52 : vector<4x1xf32> to vector<4x1x1xf32>
    %54 = vector.extract_strided_slice %1 {offsets = [0, 2, 2], sizes = [4, 16, 16], strides = [1, 1, 1]} : vector<4x24x128xf32> to vector<4x16x16xf32>
    %55 = vector.broadcast %53 : vector<4x1x1xf32> to vector<4x16x16xf32>
    %56 = arith.mulf %55, %54 : vector<4x16x16xf32>
    %57 = arith.addf %51, %56 : vector<4x16x16xf32>
    %58 = vector.extract_strided_slice %2 {offsets = [0, 9], sizes = [4, 1], strides = [1, 1]} : vector<4x10xf32> to vector<4x1xf32>
    %59 = vector.shape_cast %58 : vector<4x1xf32> to vector<4x1x1xf32>
    %60 = vector.broadcast %59 : vector<4x1x1xf32> to vector<4x16x16xf32>
    %61 = arith.addf %57, %60 : vector<4x16x16xf32>
    %c0_5 = arith.constant 0 : index
    %c0_6 = arith.constant 0 : index
    %c0_7 = arith.constant 0 : index
    %c0_8 = arith.constant 0 : index
    %62 = vector.load %arg3[%c0_5, %c0_6, %c0_7, %c0_8] : memref<1x4x16x16xf32, #tpu.memory_space<vmem>>, vector<1x4x16x16xf32>
    %63 = vector.shape_cast %62 : vector<1x4x16x16xf32> to vector<4x16x16xf32>
    %64 = vector.shape_cast %61 : vector<4x16x16xf32> to vector<1x4x16x16xf32>
    tpu.vector_store %arg3[%c0_5, %c0_6, %c0_7, %c0_8], %64 {strides = array<i32>} : memref<1x4x16x16xf32, #tpu.memory_space<vmem>>, vector<1x4x16x16xf32>,
    return
  }
  func.func @transform_0(%arg0: i32) -> (i32, i32, i32, i32) {
    %c0_i32 = arith.constant 0 : i32
    %c0_i32_0 = arith.constant 0 : i32
    %c0_i32_1 = arith.constant 0 : i32
    %c0_i32_2 = arith.constant 0 : i32
    return %arg0, %c0_i32, %c0_i32_0, %c0_i32_1 : i32, i32, i32, i32
  }
  func.func @transform_1(%arg0: i32) -> (i32, i32) {
    %c0_i32 = arith.constant 0 : i32
    %c0_i32_0 = arith.constant 0 : i32
    %c0_i32_1 = arith.constant 0 : i32
    return %c0_i32, %c0_i32_0 : i32, i32
  }
  func.func @transform_2(%arg0: i32) -> (i32, i32, i32, i32) {
    %c0_i32 = arith.constant 0 : i32
    %c0_i32_0 = arith.constant 0 : i32
    %c0_i32_1 = arith.constant 0 : i32
    %c0_i32_2 = arith.constant 0 : i32
    return %arg0, %c0_i32, %c0_i32_0, %c0_i32_1 : i32, i32, i32, i32
  }
}

module attributes {stable_mosaic.version = 11 : i64} {
  func.func @_convblock_tail_kernel(%arg0: i32, %arg1: i32, %arg2: memref<1x4x256xf32, #tpu.memory_space<vmem>>, %arg3: memref<1x4x256xf32, #tpu.memory_space<vmem>>, %arg4: memref<4x2xf32, #tpu.memory_space<vmem>>, %arg5: memref<8x4xf32, #tpu.memory_space<vmem>>, %arg6: memref<8x8xf32, #tpu.memory_space<vmem>>, %arg7: memref<8x4xf32, #tpu.memory_space<vmem>>, %arg8: memref<8x4xf32, #tpu.memory_space<vmem>>, %arg9: memref<1x8x256xf32, #tpu.memory_space<vmem>>) attributes {dimension_semantics = [#tpu.dimension_semantics<parallel>, #tpu.dimension_semantics<parallel>], iteration_bounds = array<i64: 2, 1>, scalar_prefetch = 0 : i64, scratch_operands = 0 : i64, tpu.core_type = #tpu.core_type<tc>, window_params = [{transform_indices = @transform_0, window_bounds = array<i64: 1, 4, 256>}, {transform_indices = @transform_1, window_bounds = array<i64: 1, 4, 256>}, {pipeline_mode = #tpu.pipeline_mode<synchronous>, transform_indices = @transform_2, window_bounds = array<i64: 4, 2>}, {pipeline_mode = #tpu.pipeline_mode<synchronous>, transform_indices = @transform_3, window_bounds = array<i64: 8, 4>}, {pipeline_mode = #tpu.pipeline_mode<synchronous>, transform_indices = @transform_4, window_bounds = array<i64: 8, 8>}, {pipeline_mode = #tpu.pipeline_mode<synchronous>, transform_indices = @transform_5, window_bounds = array<i64: 8, 4>}, {pipeline_mode = #tpu.pipeline_mode<synchronous>, transform_indices = @transform_6, window_bounds = array<i64: 8, 4>}, {transform_indices = @transform_7, window_bounds = array<i64: 1, 8, 256>}]} {
    %c0 = arith.constant 0 : index
    %c0_0 = arith.constant 0 : index
    %c0_1 = arith.constant 0 : index
    %0 = vector.load %arg2[%c0, %c0_0, %c0_1] : memref<1x4x256xf32, #tpu.memory_space<vmem>>, vector<1x4x256xf32>
    %1 = vector.shape_cast %0 : vector<1x4x256xf32> to vector<4x256xf32>
    %c0_2 = arith.constant 0 : index
    %c0_3 = arith.constant 0 : index
    %c0_4 = arith.constant 0 : index
    %2 = vector.load %arg3[%c0_2, %c0_3, %c0_4] : memref<1x4x256xf32, #tpu.memory_space<vmem>>, vector<1x4x256xf32>
    %3 = vector.shape_cast %2 : vector<1x4x256xf32> to vector<4x256xf32>
    %cst = arith.constant dense<0.000000e+00> : vector<256xf32>
    %4 = vector.multi_reduction <add>, %1, %cst [0] : vector<4x256xf32> to vector<256xf32>
    %5 = vector.shape_cast %4 : vector<256xf32> to vector<1x256xf32>
    %cst_5 = arith.constant 4.000000e+00 : f32
    %6 = vector.broadcast %cst_5 : f32 to vector<1x256xf32>
    %7 = arith.divf %5, %6 : vector<1x256xf32>
    %8 = vector.broadcast %7 : vector<1x256xf32> to vector<4x256xf32>
    %9 = arith.subf %1, %8 : vector<4x256xf32>
    %10 = arith.mulf %9, %9 : vector<4x256xf32>
    %cst_6 = arith.constant dense<0.000000e+00> : vector<256xf32>
    %11 = vector.multi_reduction <add>, %10, %cst_6 [0] : vector<4x256xf32> to vector<256xf32>
    %12 = vector.shape_cast %11 : vector<256xf32> to vector<1x256xf32>
    %cst_7 = arith.constant 4.000000e+00 : f32
    %13 = vector.broadcast %cst_7 : f32 to vector<1x256xf32>
    %14 = arith.divf %12, %13 : vector<1x256xf32>
    %cst_8 = arith.constant 9.99999997E-7 : f32
    %15 = vector.broadcast %cst_8 : f32 to vector<1x256xf32>
    %16 = arith.addf %14, %15 : vector<1x256xf32>
    %17 = math.rsqrt %16 : vector<1x256xf32>
    %c0_9 = arith.constant 0 : index
    %c0_10 = arith.constant 0 : index
    %18 = vector.load %arg4[%c0_9, %c0_10] : memref<4x2xf32, #tpu.memory_space<vmem>>, vector<4x1xf32>
    %c0_11 = arith.constant 0 : index
    %c1 = arith.constant 1 : index
    %19 = vector.load %arg4[%c0_11, %c1] : memref<4x2xf32, #tpu.memory_space<vmem>>, vector<4x1xf32>
    %20 = vector.broadcast %18 : vector<4x1xf32> to vector<4x256xf32>
    %21 = vector.broadcast %17 : vector<1x256xf32> to vector<4x256xf32>
    %22 = arith.mulf %20, %21 : vector<4x256xf32>
    %23 = arith.mulf %9, %22 : vector<4x256xf32>
    %24 = vector.broadcast %19 : vector<4x1xf32> to vector<4x256xf32>
    %25 = arith.addf %23, %24 : vector<4x256xf32>
    %c0_12 = arith.constant 0 : index
    %c0_13 = arith.constant 0 : index
    %26 = vector.load %arg8[%c0_12, %c0_13] : memref<8x4xf32, #tpu.memory_space<vmem>>, vector<8x4xf32>
    %27 = vector.extract_strided_slice %26 {offsets = [0, 0], sizes = [8, 1], strides = [1, 1]} : vector<8x4xf32> to vector<8x1xf32>
    %28 = vector.extract_strided_slice %26 {offsets = [0, 1], sizes = [8, 1], strides = [1, 1]} : vector<8x4xf32> to vector<8x1xf32>
    %29 = vector.extract_strided_slice %26 {offsets = [0, 2], sizes = [8, 1], strides = [1, 1]} : vector<8x4xf32> to vector<8x1xf32>
    %30 = vector.extract_strided_slice %26 {offsets = [0, 3], sizes = [8, 1], strides = [1, 1]} : vector<8x4xf32> to vector<8x1xf32>
    %c0_14 = arith.constant 0 : index
    %c0_15 = arith.constant 0 : index
    %31 = vector.load %arg5[%c0_14, %c0_15] : memref<8x4xf32, #tpu.memory_space<vmem>>, vector<8x4xf32>
    %cst_16 = arith.constant dense<0.000000e+00> : vector<8x256xf32>
    %32 = tpu.matmul %31, %25, %cst_16 {dimension_numbers = #tpu.dot_dimension_numbers<[1], [0], [0], [1], [0, 0, 1, 1], [], []>} : vector<8x4xf32>, vector<4x256xf32>, vector<8x256xf32> -> vector<8x256xf32>
    %33 = vector.broadcast %27 : vector<8x1xf32> to vector<8x256xf32>
    %34 = arith.addf %32, %33 : vector<8x256xf32>
    %cst_17 = arith.constant 5.000000e-01 : f32
    %35 = vector.broadcast %cst_17 : f32 to vector<8x256xf32>
    %36 = arith.mulf %35, %34 : vector<8x256xf32>
    %cst_18 = arith.constant 4.471500e-02 : f32
    %37 = vector.broadcast %cst_18 : f32 to vector<8x256xf32>
    %38 = arith.mulf %37, %34 : vector<8x256xf32>
    %39 = arith.mulf %38, %34 : vector<8x256xf32>
    %40 = arith.mulf %39, %34 : vector<8x256xf32>
    %41 = arith.addf %34, %40 : vector<8x256xf32>
    %cst_19 = arith.constant 0.797884583 : f32
    %42 = vector.broadcast %cst_19 : f32 to vector<8x256xf32>
    %43 = arith.mulf %42, %41 : vector<8x256xf32>
    %44 = math.tanh %43 : vector<8x256xf32>
    %cst_20 = arith.constant 1.000000e+00 : f32
    %45 = vector.broadcast %cst_20 : f32 to vector<8x256xf32>
    %46 = arith.addf %45, %44 : vector<8x256xf32>
    %47 = arith.mulf %36, %46 : vector<8x256xf32>
    %c0_21 = arith.constant 0 : index
    %c0_22 = arith.constant 0 : index
    %48 = vector.load %arg6[%c0_21, %c0_22] : memref<8x8xf32, #tpu.memory_space<vmem>>, vector<8x8xf32>
    %cst_23 = arith.constant dense<0.000000e+00> : vector<8x256xf32>
    %49 = tpu.matmul %48, %47, %cst_23 {dimension_numbers = #tpu.dot_dimension_numbers<[1], [0], [0], [1], [0, 0, 1, 1], [], []>} : vector<8x8xf32>, vector<8x256xf32>, vector<8x256xf32> -> vector<8x256xf32>
    %50 = vector.broadcast %28 : vector<8x1xf32> to vector<8x256xf32>
    %51 = arith.addf %49, %50 : vector<8x256xf32>
    %52 = vector.broadcast %29 : vector<8x1xf32> to vector<8x256xf32>
    %53 = arith.mulf %52, %51 : vector<8x256xf32>
    %c0_24 = arith.constant 0 : index
    %c0_25 = arith.constant 0 : index
    %54 = vector.load %arg7[%c0_24, %c0_25] : memref<8x4xf32, #tpu.memory_space<vmem>>, vector<8x4xf32>
    %cst_26 = arith.constant dense<0.000000e+00> : vector<8x256xf32>
    %55 = tpu.matmul %54, %3, %cst_26 {dimension_numbers = #tpu.dot_dimension_numbers<[1], [0], [0], [1], [0, 0, 1, 1], [], []>} : vector<8x4xf32>, vector<4x256xf32>, vector<8x256xf32> -> vector<8x256xf32>
    %56 = vector.broadcast %30 : vector<8x1xf32> to vector<8x256xf32>
    %57 = arith.addf %55, %56 : vector<8x256xf32>
    %58 = arith.addf %53, %57 : vector<8x256xf32>
    %c0_27 = arith.constant 0 : index
    %c0_28 = arith.constant 0 : index
    %c0_29 = arith.constant 0 : index
    %59 = vector.load %arg9[%c0_27, %c0_28, %c0_29] : memref<1x8x256xf32, #tpu.memory_space<vmem>>, vector<1x8x256xf32>
    %60 = vector.shape_cast %59 : vector<1x8x256xf32> to vector<8x256xf32>
    %61 = vector.shape_cast %58 : vector<8x256xf32> to vector<1x8x256xf32>
    tpu.vector_store %arg9[%c0_27, %c0_28, %c0_29], %61 {strides = array<i32>} : memref<1x8x256xf32, #tpu.memory_space<vmem>>, vector<1x8x256xf32>,
    return
  }
  func.func @transform_0(%arg0: i32, %arg1: i32) -> (i32, i32, i32) {
    %c0_i32 = arith.constant 0 : i32
    %c0_i32_0 = arith.constant 0 : i32
    return %arg0, %c0_i32, %arg1 : i32, i32, i32
  }
  func.func @transform_1(%arg0: i32, %arg1: i32) -> (i32, i32, i32) {
    %c0_i32 = arith.constant 0 : i32
    %c0_i32_0 = arith.constant 0 : i32
    return %arg0, %c0_i32, %arg1 : i32, i32, i32
  }
  func.func @transform_2(%arg0: i32, %arg1: i32) -> (i32, i32) {
    %c0_i32 = arith.constant 0 : i32
    %c0_i32_0 = arith.constant 0 : i32
    %c0_i32_1 = arith.constant 0 : i32
    return %c0_i32, %c0_i32_0 : i32, i32
  }
  func.func @transform_3(%arg0: i32, %arg1: i32) -> (i32, i32) {
    %c0_i32 = arith.constant 0 : i32
    %c0_i32_0 = arith.constant 0 : i32
    %c0_i32_1 = arith.constant 0 : i32
    return %c0_i32, %c0_i32_0 : i32, i32
  }
  func.func @transform_4(%arg0: i32, %arg1: i32) -> (i32, i32) {
    %c0_i32 = arith.constant 0 : i32
    %c0_i32_0 = arith.constant 0 : i32
    %c0_i32_1 = arith.constant 0 : i32
    return %c0_i32, %c0_i32_0 : i32, i32
  }
  func.func @transform_5(%arg0: i32, %arg1: i32) -> (i32, i32) {
    %c0_i32 = arith.constant 0 : i32
    %c0_i32_0 = arith.constant 0 : i32
    %c0_i32_1 = arith.constant 0 : i32
    return %c0_i32, %c0_i32_0 : i32, i32
  }
  func.func @transform_6(%arg0: i32, %arg1: i32) -> (i32, i32) {
    %c0_i32 = arith.constant 0 : i32
    %c0_i32_0 = arith.constant 0 : i32
    %c0_i32_1 = arith.constant 0 : i32
    return %c0_i32, %c0_i32_0 : i32, i32
  }
  func.func @transform_7(%arg0: i32, %arg1: i32) -> (i32, i32, i32) {
    %c0_i32 = arith.constant 0 : i32
    %c0_i32_0 = arith.constant 0 : i32
    return %arg0, %c0_i32, %arg1 : i32, i32, i32
  }
}

</mosaic_0001>

<llo_original>
// kernel: _lambda_.2
$region0: #{_lambda_.2}
  #allocation0 [shape = 'u32[]', space=smem, size = 0x4, offset = 0x4, fixed_abs, tag = 'smem constant byte address 0x4 - core index']
  #allocation1 [shape = 'u32[144,128]{1,0:T(1,128)}', space=vmem, size = 0x12000, scoped, tag = 'internal scratch']
  %s0 = inlined_call_operand.vmem [shape: f32[2,4,24,128], index: 0, kind: input, shape index: {}]
  %s1 = inlined_call_operand.vmem [shape: f32[4,10], index: 1, kind: input, shape index: {}]
  %s2 = inlined_call_operand.vmem [shape: f32[2,4,16,16], index: 2, kind: output, shape index: {}]
  %s3 = sld [smem:[#allocation0]]
  $region41: #{_lambda_.2} parent=0
    _
  %s5 = ssub.s32 1, %s3
  %s6 = scalar_select 0, %s5, %s3
  loop: start=0, step=1, limit=4
  $region2: #{_lambda_.2} parent=0 // loop_pre_header
    _
  $region3: #{_lambda_.2} parent=0 // loop_header
    %s8 = sphi 0, %s12
    %p9 = scmp.ge.s32.totalorder %s8, 4
    %s18 = sphi 0, %s20
    %s21 = sphi 0, %s18
    %s22 = sphi 0, %s21
    %s38 = sphi 0, %s22
    %s42 = sphi 0, %s42
    %s44 = sphi 0, %s42
    %s45 = sphi 0, %s44
    %s59 = sphi 0, %s45
    %s65 = sphi 0, %s67
    %s68 = sphi 0, %s65
    %s69 = sphi 0, %s68
    %s85 = sphi 0, %s69
  $region4: #{_lambda_.2} parent=0 // loop_header_branch
    %11 = sbr.rel (%p9) target = $region8
  $region5: #{_lambda_.2} parent=0 // loop_body
    %s13 = ssub.s32 %s8, 1
    %s14 = ssub.s32 %s8, 2
    %s15 = sadd.s32 %s8, 1
    %s16 = ssub.s32 %s8, %s15
    %p17 = scmp.eq.s32.totalorder %s16, 0
    %s19 = sadd.s32 %s18, 1
    %s20 = scalar_select %p17, %s18, %s19
    %p23 = pneg %p17
    %p24 = scmp.eq.s32.totalorder %s8, 1
    %p25 = por %p23, %p24
    %p26 = scmp.ne.s32.totalorder %s18, %s21
    %p27 = scmp.eq.s32.totalorder %s8, 0
    %p28 = por %p26, %p27
    %p29 = scmp.ne.s32.totalorder %s18, %s21
    %p30 = scmp.eq.s32.totalorder %s13, 1
    %p31 = por %p29, %p30
    %p32 = scmp.ne.s32.totalorder %s21, %s22
    %p33 = scmp.eq.s32.totalorder %s13, 0
    %p34 = por %p32, %p33
    %p35 = scmp.ne.s32.totalorder %s21, %s22
    %p36 = scmp.eq.s32.totalorder %s14, 1
    %p37 = por %p35, %p36
    %p39 = scmp.ne.s32.totalorder %s22, %s38
    %p40 = scmp.eq.s32.totalorder %s14, 0
    %p41 = por %p39, %p40
    %s43 = sadd.s32 %s42, 1
    %p46 = scmp.eq.s32.totalorder %s8, 1
    %p47 = scmp.ne.s32.totalorder %s42, %s44
    %p48 = scmp.eq.s32.totalorder %s8, 0
    %p49 = por %p47, %p48
    %p50 = scmp.ne.s32.totalorder %s42, %s44
    %p51 = scmp.eq.s32.totalorder %s13, 1
    %p52 = por %p50, %p51
    %p53 = scmp.ne.s32.totalorder %s44, %s45
    %p54 = scmp.eq.s32.totalorder %s13, 0
    %p55 = por %p53, %p54
    %p56 = scmp.ne.s32.totalorder %s44, %s45
    %p57 = scmp.eq.s32.totalorder %s14, 1
    %p58 = por %p56, %p57
    %p60 = scmp.ne.s32.totalorder %s45, %s59
    %p61 = scmp.eq.s32.totalorder %s14, 0
    %p62 = por %p60, %p61
    %s63 = ssub.s32 %s8, %s15
    %p64 = scmp.eq.s32.totalorder %s63, 0
    %s66 = sadd.s32 %s65, 1
    %s67 = scalar_select %p64, %s65, %s66
    %p70 = pneg %p64
    %p71 = scmp.eq.s32.totalorder %s8, 1
    %p72 = por %p70, %p71
    %p73 = scmp.ne.s32.totalorder %s65, %s68
    %p74 = scmp.eq.s32.totalorder %s8, 0
    %p75 = por %p73, %p74
    %p76 = scmp.ne.s32.totalorder %s65, %s68
    %p77 = scmp.eq.s32.totalorder %s13, 1
    %p78 = por %p76, %p77
    %p79 = scmp.ne.s32.totalorder %s68, %s69
    %p80 = scmp.eq.s32.totalorder %s13, 0
    %p81 = por %p79, %p80
    %p82 = scmp.ne.s32.totalorder %s68, %s69
    %p83 = scmp.eq.s32.totalorder %s14, 1
    %p84 = por %p82, %p83
    %p86 = scmp.ne.s32.totalorder %s69, %s85
    %p87 = scmp.eq.s32.totalorder %s14, 0
    %p88 = por %p86, %p87
    %p89 = scmp.le.s32.totalorder 1, %s8
    %p90 = scmp.lt.s32.totalorder %s8, 3
    %p91 = pnand %p89, %p90
    %p92 = pneg %p91
    // Predicated region
    $region9: #{_lambda_.2} parent=5 // pred_check
      _
    $region10: #{_lambda_.2} parent=5 // pred_check_branch
      %94 = sbr.rel (%p91) target = $region12
    $region11: #{_lambda_.2} parent=5 // pred_region
      %s95 = ssub.s32 %s8, 1
      // Predicated region
      $region13: #{_lambda_.2} parent=11 // pred_check
        %p96 = pneg %p55
      $region14: #{_lambda_.2} parent=11 // pred_check_branch
        %98 = sbr.rel (%p96) target = $region16
      $region15: #{_lambda_.2} parent=11 // pred_region
        _
      $region16: #{_lambda_.2} parent=11 // pred_fallthru
        _
    $region12: #{_lambda_.2} parent=5 // pred_fallthru
      _
    %p99 = scmp.lt.s32.totalorder %s8, 2
    // Predicated region
    $region17: #{_lambda_.2} parent=5 // pred_check
      %p100 = pneg %p99
    $region18: #{_lambda_.2} parent=5 // pred_check_branch
      %102 = sbr.rel (%p100) target = $region20
    $region19: #{_lambda_.2} parent=5 // pred_region
      // Predicated region
      $region21: #{_lambda_.2} parent=19 // pred_check
        %p103 = pneg %p28
      $region22: #{_lambda_.2} parent=19 // pred_check_branch
        %105 = sbr.rel (%p103) target = $region24
      $region23: #{_lambda_.2} parent=19 // pred_region
        %p106 = scmp.lt.s32.totalorder %s8, 1
        %s107 = scalar_select %p106, %s8, 1
        %s108 = smul.addr %s107, 12
        %s109 = smul.addr %s108, 8
        %s110 = scalar_lea.vmem %s0, %s109
      $region24: #{_lambda_.2} parent=19 // pred_fallthru
        _
    $region20: #{_lambda_.2} parent=5 // pred_fallthru
      _
    %p111 = scmp.le.s32.totalorder 1, %s8
    %p112 = scmp.lt.s32.totalorder %s8, 3
    %p113 = pnand %p111, %p112
    %p114 = pneg %p113
    // Predicated region
    $region25: #{_lambda_.2} parent=5 // pred_check
      _
    $region26: #{_lambda_.2} parent=5 // pred_check_branch
      %116 = sbr.rel (%p113) target = $region28
    $region27: #{_lambda_.2} parent=5 // pred_region
      %s117 = ssub.s32 %s8, 1
      %p118 = scmp.lt.s32.totalorder %s13, 1
      %s119 = scalar_select %p118, %s13, 1
      %s120 = smul.addr %s119, 12
      %s121 = smul.addr %s120, 8
      %s122 = scalar_lea.vmem %s0, %s121
      %p123 = pneg %p34
      %p124 = pneg %p31
      %p125 = pneg %p55
      %p126 = pneg %p52
      %p127 = pneg %p81
      %p128 = pneg %p78
      %p129 = scmp.lt.s32.totalorder %s13, 1
      %s130 = scalar_select %p129, %s13, 1
      %s131 = smul.addr %s130, 8
      %s132 = smul.addr %s131, 8
      %s133 = scalar_lea.vmem %s2, %s132
      %p134 = scmp.lt.s32.totalorder %s13, 1
      %s135 = scalar_select %p134, %s13, 1
      %s136 = smul.addr %s135, 12
      %s137 = smul.addr %s136, 8
      %s138 = scalar_lea.vmem %s0, %s137
      %p139 = scmp.lt.s32.totalorder %s13, 1
      %s140 = scalar_select %p139, %s13, 1
      %s141 = smul.addr %s140, 8
      %s142 = smul.addr %s141, 8
      %s143 = scalar_lea.vmem %s2, %s142
      %v144 = vld [vmem:[%s138] sm:$0xff]
      %v145 = vld [vmem:[%s138 + $0x8] sm:$0xff]
      %v146 = vld [vmem:[%s138 + $0x10] sm:$0xff]
      %v147 = vld [vmem:[%s138 + $0x18] sm:$0xff]
      %v148 = vld [vmem:[%s138 + $0x20] sm:$0xff]
      %v149 = vld [vmem:[%s138 + $0x28] sm:$0xff]
      %v150 = vld [vmem:[%s138 + $0x30] sm:$0xff]
      %v151 = vld [vmem:[%s138 + $0x38] sm:$0xff]
      %v152 = vld [vmem:[%s138 + $0x40] sm:$0xff]
      %v153 = vld [vmem:[%s138 + $0x48] sm:$0xff]
      %v154 = vld [vmem:[%s138 + $0x50] sm:$0xff]
      %v155 = vld [vmem:[%s138 + $0x58] sm:$0xff]
      %v156 = vld [vmem:[%s1] sm:$0xf]
      %v159 = vunpack.c.l.s4 1966171168
      %v160 = vunpack.c.0.s8 %v159
      %v161 = vlaneseq
      %v162 = vshrl.u32 %v161, 7
      %v163 = vsub.s32 %v160, %v162
      %v164 = vrot.slane %v156, %v163
      %v165 = vcombine.high %v164, %v164
      %v167 = vunpack.c.l.s4 1966171168
      %v168 = vunpack.c.0.s8 %v167
      %v169 = vlaneseq
      %v170 = vshrl.u32 %v169, 7
      %v171 = vsub.s32 %v168, %v170
      %v172 = vrot.slane %v164, %v171
      %v174 = vunpack.c.l.s4 1966171168
      %v175 = vunpack.c.0.s8 %v174
      %v176 = vlaneseq
      %v177 = vshrl.u32 %v176, 7
      %v178 = vsub.s32 %v175, %v177
      %v179 = vrot.slane %v165, %v178
      %v180 = vcombine.high %v172, %v172
      %v181 = vcombine.high %v179, %v179
      %v182 = vlaneseq
      %v183 = vshrl.u32 %v182, 7
      %v184 = vsub.s32 0, %v183
      %v185 = vrot.slane %v172, %v184
      %v186 = vlaneseq
      %v187 = vshrl.u32 %v186, 7
      %v188 = vsub.s32 0, %v187
      %v189 = vrot.slane %v179, %v188
      %v190 = vlaneseq
      %v191 = vshrl.u32 %v190, 7
      %v192 = vsub.s32 0, %v191
      %v193 = vrot.slane %v180, %v192
      %v194 = vlaneseq
      %v195 = vshrl.u32 %v194, 7
      %v196 = vsub.s32 0, %v195
      %v197 = vrot.slane %v181, %v196
      %198 = vset.pattern.permute.xlu0 0
      %199 = vperm.xlu0 %198, %v185
      %v200 = vpop.permute.xlu0 %199
      %202 = vset.pattern.permute.xlu0 0
      %203 = vperm.xlu0 %202, %v189
      %v204 = vpop.permute.xlu0 %203
      %206 = vset.pattern.permute.xlu0 0
      %207 = vperm.xlu0 %206, %v193
      %v208 = vpop.permute.xlu0 %207
      %210 = vset.pattern.permute.xlu0 0
      %211 = vperm.xlu0 %210, %v197
      %v212 = vpop.permute.xlu0 %211
      %v214 = vmul.f32 %v200, %v144
      %v215 = vmul.f32 %v200, %v145
      %v216 = vmul.f32 %v204, %v147
      %v217 = vmul.f32 %v204, %v148
      %v218 = vmul.f32 %v208, %v150
      %v219 = vmul.f32 %v208, %v151
      %v220 = vmul.f32 %v212, %v153
      %v221 = vmul.f32 %v212, %v154
      %v222 = vadd.f32 %v214, 0.0
      %v223 = vadd.f32 %v215, 0.0
      %v224 = vadd.f32 %v216, 0.0
      %v225 = vadd.f32 %v217, 0.0
      %v226 = vadd.f32 %v218, 0.0
      %v227 = vadd.f32 %v219, 0.0
      %v228 = vadd.f32 %v220, 0.0
      %v229 = vadd.f32 %v221, 0.0
      %230 = vset.pattern.permute.xlu0 1
      %231 = vperm.xlu0 %230, %v185
      %v232 = vpop.permute.xlu0 %231
      %234 = vset.pattern.permute.xlu0 1
      %235 = vperm.xlu0 %234, %v189
      %v236 = vpop.permute.xlu0 %235
      %238 = vset.pattern.permute.xlu0 1
      %239 = vperm.xlu0 %238, %v193
      %v240 = vpop.permute.xlu0 %239
      %242 = vset.pattern.permute.xlu0 1
      %243 = vperm.xlu0 %242, %v197
      %v244 = vpop.permute.xlu0 %243
      %v246 = vmul.f32 %v232, %v144
      %v247 = vmul.f32 %v232, %v145
      %v248 = vmul.f32 %v236, %v147
      %v249 = vmul.f32 %v236, %v148
      %v250 = vmul.f32 %v240, %v150
      %v251 = vmul.f32 %v240, %v151
      %v252 = vmul.f32 %v244, %v153
      %v253 = vmul.f32 %v244, %v154
      %262 = vrot.lane.b32.xlu0 %v246, 127
      %v263 = vpop.permute.xlu0 %262
      %264 = vrot.lane.b32.xlu0 %v247, 127
      %v265 = vpop.permute.xlu0 %264
      %266 = vrot.lane.b32.xlu0 %v248, 127
      %v267 = vpop.permute.xlu0 %266
      %268 = vrot.lane.b32.xlu0 %v249, 127
      %v269 = vpop.permute.xlu0 %268
      %270 = vrot.lane.b32.xlu0 %v250, 127
      %v271 = vpop.permute.xlu0 %270
      %272 = vrot.lane.b32.xlu0 %v251, 127
      %v273 = vpop.permute.xlu0 %272
      %274 = vrot.lane.b32.xlu0 %v252, 127
      %v275 = vpop.permute.xlu0 %274
      %276 = vrot.lane.b32.xlu0 %v253, 127
      %v277 = vpop.permute.xlu0 %276
      %v286 = vadd.f32 %v222, %v263
      %v287 = vadd.f32 %v223, %v265
      %v288 = vadd.f32 %v224, %v267
      %v289 = vadd.f32 %v225, %v269
      %v290 = vadd.f32 %v226, %v271
      %v291 = vadd.f32 %v227, %v273
      %v292 = vadd.f32 %v228, %v275
      %v293 = vadd.f32 %v229, %v277
      %294 = vset.pattern.permute.xlu0 2
      %295 = vperm.xlu0 %294, %v185
      %v296 = vpop.permute.xlu0 %295
      %298 = vset.pattern.permute.xlu0 2
      %299 = vperm.xlu0 %298, %v189
      %v300 = vpop.permute.xlu0 %299
      %302 = vset.pattern.permute.xlu0 2
      %303 = vperm.xlu0 %302, %v193
      %v304 = vpop.permute.xlu0 %303
      %306 = vset.pattern.permute.xlu0 2
      %307 = vperm.xlu0 %306, %v197
      %v308 = vpop.permute.xlu0 %307
      %v310 = vmul.f32 %v296, %v144
      %v311 = vmul.f32 %v296, %v145
      %v312 = vmul.f32 %v300, %v147
      %v313 = vmul.f32 %v300, %v148
      %v314 = vmul.f32 %v304, %v150
      %v315 = vmul.f32 %v304, %v151
      %v316 = vmul.f32 %v308, %v153
      %v317 = vmul.f32 %v308, %v154
      %326 = vrot.lane.b32.xlu0 %v310, 126
      %v327 = vpop.permute.xlu0 %326
      %328 = vrot.lane.b32.xlu0 %v311, 126
      %v329 = vpop.permute.xlu0 %328
      %330 = vrot.lane.b32.xlu0 %v312, 126
      %v331 = vpop.permute.xlu0 %330
      %332 = vrot.lane.b32.xlu0 %v313, 126
      %v333 = vpop.permute.xlu0 %332
      %334 = vrot.lane.b32.xlu0 %v314, 126
      %v335 = vpop.permute.xlu0 %334
      %336 = vrot.lane.b32.xlu0 %v315, 126
      %v337 = vpop.permute.xlu0 %336
      %338 = vrot.lane.b32.xlu0 %v316, 126
      %v339 = vpop.permute.xlu0 %338
      %340 = vrot.lane.b32.xlu0 %v317, 126
      %v341 = vpop.permute.xlu0 %340
      %v350 = vadd.f32 %v286, %v327
      %v351 = vadd.f32 %v287, %v329
      %v352 = vadd.f32 %v288, %v331
      %v353 = vadd.f32 %v289, %v333
      %v354 = vadd.f32 %v290, %v335
      %v355 = vadd.f32 %v291, %v337
      %v356 = vadd.f32 %v292, %v339
      %v357 = vadd.f32 %v293, %v341
      %358 = vset.pattern.permute.xlu0 3
      %359 = vperm.xlu0 %358, %v185
      %v360 = vpop.permute.xlu0 %359
      %362 = vset.pattern.permute.xlu0 3
      %363 = vperm.xlu0 %362, %v189
      %v364 = vpop.permute.xlu0 %363
      %366 = vset.pattern.permute.xlu0 3
      %367 = vperm.xlu0 %366, %v193
      %v368 = vpop.permute.xlu0 %367
      %370 = vset.pattern.permute.xlu0 3
      %371 = vperm.xlu0 %370, %v197
      %v372 = vpop.permute.xlu0 %371
      %v374 = vmul.f32 %v360, %v144
      %v375 = vmul.f32 %v360, %v145
      %v376 = vmul.f32 %v360, %v146
      %v377 = vmul.f32 %v364, %v147
      %v378 = vmul.f32 %v364, %v148
      %v379 = vmul.f32 %v364, %v149
      %v380 = vmul.f32 %v368, %v150
      %v381 = vmul.f32 %v368, %v151
      %v382 = vmul.f32 %v368, %v152
      %v383 = vmul.f32 %v372, %v153
      %v384 = vmul.f32 %v372, %v154
      %v385 = vmul.f32 %v372, %v155
      %vm398 = vcmask 1046528
      %v399 = vrot.slane %v374, 1
      %v400 = vrot.slane %v375, 1
      %v401 = vsel %vm398, %v399, %v400
      %v402 = vrot.slane %v376, 1
      %v403 = vsel %vm398, %v400, %v402
      %v404 = vrot.slane %v377, 1
      %v405 = vrot.slane %v378, 1
      %v406 = vsel %vm398, %v404, %v405
      %v407 = vrot.slane %v379, 1
      %v408 = vsel %vm398, %v405, %v407
      %v409 = vrot.slane %v380, 1
      %v410 = vrot.slane %v381, 1
      %v411 = vsel %vm398, %v409, %v410
      %v412 = vrot.slane %v382, 1
      %v413 = vsel %vm398, %v410, %v412
      %v414 = vrot.slane %v383, 1
      %v415 = vrot.slane %v384, 1
      %v416 = vsel %vm398, %v414, %v415
      %v417 = vrot.slane %v385, 1
      %v418 = vsel %vm398, %v415, %v417
      %v427 = vadd.f32 %v350, %v401
      %v428 = vadd.f32 %v351, %v403
      %v429 = vadd.f32 %v352, %v406
      %v430 = vadd.f32 %v353, %v408
      %v431 = vadd.f32 %v354, %v411
      %v432 = vadd.f32 %v355, %v413
      %v433 = vadd.f32 %v356, %v416
      %v434 = vadd.f32 %v357, %v418
      %435 = vset.pattern.permute.xlu0 4
      %436 = vperm.xlu0 %435, %v185
      %v437 = vpop.permute.xlu0 %436
      %439 = vset.pattern.permute.xlu0 4
      %440 = vperm.xlu0 %439, %v189
      %v441 = vpop.permute.xlu0 %440
      %443 = vset.pattern.permute.xlu0 4
      %444 = vperm.xlu0 %443, %v193
      %v445 = vpop.permute.xlu0 %444
      %447 = vset.pattern.permute.xlu0 4
      %448 = vperm.xlu0 %447, %v197
      %v449 = vpop.permute.xlu0 %448
      %v451 = vmul.f32 %v437, %v144
      %v452 = vmul.f32 %v437, %v145
      %v453 = vmul.f32 %v437, %v146
      %v454 = vmul.f32 %v441, %v147
      %v455 = vmul.f32 %v441, %v148
      %v456 = vmul.f32 %v441, %v149
      %v457 = vmul.f32 %v445, %v150
      %v458 = vmul.f32 %v445, %v151
      %v459 = vmul.f32 %v445, %v152
      %v460 = vmul.f32 %v449, %v153
      %v461 = vmul.f32 %v449, %v154
      %v462 = vmul.f32 %v449, %v155
      %v475 = vrot.slane %v451, 1
      %v476 = vrot.slane %v452, 1
      %v477 = vsel %vm398, %v475, %v476
      %v478 = vrot.slane %v453, 1
      %v479 = vsel %vm398, %v476, %v478
      %v480 = vrot.slane %v454, 1
      %v481 = vrot.slane %v455, 1
      %v482 = vsel %vm398, %v480, %v481
      %v483 = vrot.slane %v456, 1
      %v484 = vsel %vm398, %v481, %v483
      %v485 = vrot.slane %v457, 1
      %v486 = vrot.slane %v458, 1
      %v487 = vsel %vm398, %v485, %v486
      %v488 = vrot.slane %v459, 1
      %v489 = vsel %vm398, %v486, %v488
      %v490 = vrot.slane %v460, 1
      %v491 = vrot.slane %v461, 1
      %v492 = vsel %vm398, %v490, %v491
      %v493 = vrot.slane %v462, 1
      %v494 = vsel %vm398, %v491, %v493
      %495 = vrot.lane.b32.xlu0 %v477, 127
      %v496 = vpop.permute.xlu0 %495
      %497 = vrot.lane.b32.xlu0 %v479, 127
      %v498 = vpop.permute.xlu0 %497
      %499 = vrot.lane.b32.xlu0 %v482, 127
      %v500 = vpop.permute.xlu0 %499
      %501 = vrot.lane.b32.xlu0 %v484, 127
      %v502 = vpop.permute.xlu0 %501
      %503 = vrot.lane.b32.xlu0 %v487, 127
      %v504 = vpop.permute.xlu0 %503
      %505 = vrot.lane.b32.xlu0 %v489, 127
      %v506 = vpop.permute.xlu0 %505
      %507 = vrot.lane.b32.xlu0 %v492, 127
      %v508 = vpop.permute.xlu0 %507
      %509 = vrot.lane.b32.xlu0 %v494, 127
      %v510 = vpop.permute.xlu0 %509
      %v519 = vadd.f32 %v427, %v496
      %v520 = vadd.f32 %v428, %v498
      %v521 = vadd.f32 %v429, %v500
      %v522 = vadd.f32 %v430, %v502
      %v523 = vadd.f32 %v431, %v504
      %v524 = vadd.f32 %v432, %v506
      %v525 = vadd.f32 %v433, %v508
      %v526 = vadd.f32 %v434, %v510
      %527 = vset.pattern.permute.xlu0 5
      %528 = vperm.xlu0 %527, %v185
      %v529 = vpop.permute.xlu0 %528
      %531 = vset.pattern.permute.xlu0 5
      %532 = vperm.xlu0 %531, %v189
      %v533 = vpop.permute.xlu0 %532
      %535 = vset.pattern.permute.xlu0 5
      %536 = vperm.xlu0 %535, %v193
      %v537 = vpop.permute.xlu0 %536
      %539 = vset.pattern.permute.xlu0 5
      %540 = vperm.xlu0 %539, %v197
      %v541 = vpop.permute.xlu0 %540
      %v543 = vmul.f32 %v529, %v144
      %v544 = vmul.f32 %v529, %v145
      %v545 = vmul.f32 %v529, %v146
      %v546 = vmul.f32 %v533, %v147
      %v547 = vmul.f32 %v533, %v148
      %v548 = vmul.f32 %v533, %v149
      %v549 = vmul.f32 %v537, %v150
      %v550 = vmul.f32 %v537, %v151
      %v551 = vmul.f32 %v537, %v152
      %v552 = vmul.f32 %v541, %v153
      %v553 = vmul.f32 %v541, %v154
      %v554 = vmul.f32 %v541, %v155
      %v567 = vrot.slane %v543, 1
      %v568 = vrot.slane %v544, 1
      %v569 = vsel %vm398, %v567, %v568
      %v570 = vrot.slane %v545, 1
      %v571 = vsel %vm398, %v568, %v570
      %v572 = vrot.slane %v546, 1
      %v573 = vrot.slane %v547, 1
      %v574 = vsel %vm398, %v572, %v573
      %v575 = vrot.slane %v548, 1
      %v576 = vsel %vm398, %v573, %v575
      %v577 = vrot.slane %v549, 1
      %v578 = vrot.slane %v550, 1
      %v579 = vsel %vm398, %v577, %v578
      %v580 = vrot.slane %v551, 1
      %v581 = vsel %vm398, %v578, %v580
      %v582 = vrot.slane %v552, 1
      %v583 = vrot.slane %v553, 1
      %v584 = vsel %vm398, %v582, %v583
      %v585 = vrot.slane %v554, 1
      %v586 = vsel %vm398, %v583, %v585
      %587 = vrot.lane.b32.xlu0 %v569, 126
      %v588 = vpop.permute.xlu0 %587
      %589 = vrot.lane.b32.xlu0 %v571, 126
      %v590 = vpop.permute.xlu0 %589
      %591 = vrot.lane.b32.xlu0 %v574, 126
      %v592 = vpop.permute.xlu0 %591
      %593 = vrot.lane.b32.xlu0 %v576, 126
      %v594 = vpop.permute.xlu0 %593
      %595 = vrot.lane.b32.xlu0 %v579, 126
      %v596 = vpop.permute.xlu0 %595
      %597 = vrot.lane.b32.xlu0 %v581, 126
      %v598 = vpop.permute.xlu0 %597
      %599 = vrot.lane.b32.xlu0 %v584, 126
      %v600 = vpop.permute.xlu0 %599
      %601 = vrot.lane.b32.xlu0 %v586, 126
      %v602 = vpop.permute.xlu0 %601
      %v611 = vadd.f32 %v519, %v588
      %v612 = vadd.f32 %v520, %v590
      %v613 = vadd.f32 %v521, %v592
      %v614 = vadd.f32 %v522, %v594
      %v615 = vadd.f32 %v523, %v596
      %v616 = vadd.f32 %v524, %v598
      %v617 = vadd.f32 %v525, %v600
      %v618 = vadd.f32 %v526, %v602
      %619 = vset.pattern.permute.xlu0 6
      %620 = vperm.xlu0 %619, %v185
      %v621 = vpop.permute.xlu0 %620
      %623 = vset.pattern.permute.xlu0 6
      %624 = vperm.xlu0 %623, %v189
      %v625 = vpop.permute.xlu0 %624
      %627 = vset.pattern.permute.xlu0 6
      %628 = vperm.xlu0 %627, %v193
      %v629 = vpop.permute.xlu0 %628
      %631 = vset.pattern.permute.xlu0 6
      %632 = vperm.xlu0 %631, %v197
      %v633 = vpop.permute.xlu0 %632
      %v635 = vmul.f32 %v621, %v144
      %v636 = vmul.f32 %v621, %v145
      %v637 = vmul.f32 %v621, %v146
      %v638 = vmul.f32 %v625, %v147
      %v639 = vmul.f32 %v625, %v148
      %v640 = vmul.f32 %v625, %v149
      %v641 = vmul.f32 %v629, %v150
      %v642 = vmul.f32 %v629, %v151
      %v643 = vmul.f32 %v629, %v152
      %v644 = vmul.f32 %v633, %v153
      %v645 = vmul.f32 %v633, %v154
      %v646 = vmul.f32 %v633, %v155
      %vm659 = vcmask 1045504
      %v660 = vrot.slane %v635, 2
      %v661 = vrot.slane %v636, 2
      %v662 = vsel %vm659, %v660, %v661
      %v663 = vrot.slane %v637, 2
      %v664 = vsel %vm659, %v661, %v663
      %v665 = vrot.slane %v638, 2
      %v666 = vrot.slane %v639, 2
      %v667 = vsel %vm659, %v665, %v666
      %v668 = vrot.slane %v640, 2
      %v669 = vsel %vm659, %v666, %v668
      %v670 = vrot.slane %v641, 2
      %v671 = vrot.slane %v642, 2
      %v672 = vsel %vm659, %v670, %v671
      %v673 = vrot.slane %v643, 2
      %v674 = vsel %vm659, %v671, %v673
      %v675 = vrot.slane %v644, 2
      %v676 = vrot.slane %v645, 2
      %v677 = vsel %vm659, %v675, %v676
      %v678 = vrot.slane %v646, 2
      %v679 = vsel %vm659, %v676, %v678
      %v688 = vadd.f32 %v611, %v662
      %v689 = vadd.f32 %v612, %v664
      %v690 = vadd.f32 %v613, %v667
      %v691 = vadd.f32 %v614, %v669
      %v692 = vadd.f32 %v615, %v672
      %v693 = vadd.f32 %v616, %v674
      %v694 = vadd.f32 %v617, %v677
      %v695 = vadd.f32 %v618, %v679
      %696 = vset.pattern.permute.xlu0 7
      %697 = vperm.xlu0 %696, %v185
      %v698 = vpop.permute.xlu0 %697
      %700 = vset.pattern.permute.xlu0 7
      %701 = vperm.xlu0 %700, %v189
      %v702 = vpop.permute.xlu0 %701
      %704 = vset.pattern.permute.xlu0 7
      %705 = vperm.xlu0 %704, %v193
      %v706 = vpop.permute.xlu0 %705
      %708 = vset.pattern.permute.xlu0 7
      %709 = vperm.xlu0 %708, %v197
      %v710 = vpop.permute.xlu0 %709
      %v712 = vmul.f32 %v698, %v144
      %v713 = vmul.f32 %v698, %v145
      %v714 = vmul.f32 %v698, %v146
      %v715 = vmul.f32 %v702, %v147
      %v716 = vmul.f32 %v702, %v148
      %v717 = vmul.f32 %v702, %v149
      %v718 = vmul.f32 %v706, %v150
      %v719 = vmul.f32 %v706, %v151
      %v720 = vmul.f32 %v706, %v152
      %v721 = vmul.f32 %v710, %v153
      %v722 = vmul.f32 %v710, %v154
      %v723 = vmul.f32 %v710, %v155
      %v736 = vrot.slane %v712, 2
      %v737 = vrot.slane %v713, 2
      %v738 = vsel %vm659, %v736, %v737
      %v739 = vrot.slane %v714, 2
      %v740 = vsel %vm659, %v737, %v739
      %v741 = vrot.slane %v715, 2
      %v742 = vrot.slane %v716, 2
      %v743 = vsel %vm659, %v741, %v742
      %v744 = vrot.slane %v717, 2
      %v745 = vsel %vm659, %v742, %v744
      %v746 = vrot.slane %v718, 2
      %v747 = vrot.slane %v719, 2
      %v748 = vsel %vm659, %v746, %v747
      %v749 = vrot.slane %v720, 2
      %v750 = vsel %vm659, %v747, %v749
      %v751 = vrot.slane %v721, 2
      %v752 = vrot.slane %v722, 2
      %v753 = vsel %vm659, %v751, %v752
      %v754 = vrot.slane %v723, 2
      %v755 = vsel %vm659, %v752, %v754
      %756 = vrot.lane.b32.xlu0 %v738, 127
      %v757 = vpop.permute.xlu0 %756
      %758 = vrot.lane.b32.xlu0 %v740, 127
      %v759 = vpop.permute.xlu0 %758
      %760 = vrot.lane.b32.xlu0 %v743, 127
      %v761 = vpop.permute.xlu0 %760
      %762 = vrot.lane.b32.xlu0 %v745, 127
      %v763 = vpop.permute.xlu0 %762
      %764 = vrot.lane.b32.xlu0 %v748, 127
      %v765 = vpop.permute.xlu0 %764
      %766 = vrot.lane.b32.xlu0 %v750, 127
      %v767 = vpop.permute.xlu0 %766
      %768 = vrot.lane.b32.xlu0 %v753, 127
      %v769 = vpop.permute.xlu0 %768
      %770 = vrot.lane.b32.xlu0 %v755, 127
      %v771 = vpop.permute.xlu0 %770
      %v780 = vadd.f32 %v688, %v757
      %v781 = vadd.f32 %v689, %v759
      %v782 = vadd.f32 %v690, %v761
      %v783 = vadd.f32 %v691, %v763
      %v784 = vadd.f32 %v692, %v765
      %v785 = vadd.f32 %v693, %v767
      %v786 = vadd.f32 %v694, %v769
      %v787 = vadd.f32 %v695, %v771
      %788 = vset.pattern.permute.xlu0 8
      %789 = vperm.xlu0 %788, %v185
      %v790 = vpop.permute.xlu0 %789
      %792 = vset.pattern.permute.xlu0 8
      %793 = vperm.xlu0 %792, %v189
      %v794 = vpop.permute.xlu0 %793
      %796 = vset.pattern.permute.xlu0 8
      %797 = vperm.xlu0 %796, %v193
      %v798 = vpop.permute.xlu0 %797
      %800 = vset.pattern.permute.xlu0 8
      %801 = vperm.xlu0 %800, %v197
      %v802 = vpop.permute.xlu0 %801
      %v804 = vmul.f32 %v790, %v144
      %v805 = vmul.f32 %v790, %v145
      %v806 = vmul.f32 %v790, %v146
      %v807 = vmul.f32 %v794, %v147
      %v808 = vmul.f32 %v794, %v148
      %v809 = vmul.f32 %v794, %v149
      %v810 = vmul.f32 %v798, %v150
      %v811 = vmul.f32 %v798, %v151
      %v812 = vmul.f32 %v798, %v152
      %v813 = vmul.f32 %v802, %v153
      %v814 = vmul.f32 %v802, %v154
      %v815 = vmul.f32 %v802, %v155
      %v828 = vrot.slane %v804, 2
      %v829 = vrot.slane %v805, 2
      %v830 = vsel %vm659, %v828, %v829
      %v831 = vrot.slane %v806, 2
      %v832 = vsel %vm659, %v829, %v831
      %v833 = vrot.slane %v807, 2
      %v834 = vrot.slane %v808, 2
      %v835 = vsel %vm659, %v833, %v834
      %v836 = vrot.slane %v809, 2
      %v837 = vsel %vm659, %v834, %v836
      %v838 = vrot.slane %v810, 2
      %v839 = vrot.slane %v811, 2
      %v840 = vsel %vm659, %v838, %v839
      %v841 = vrot.slane %v812, 2
      %v842 = vsel %vm659, %v839, %v841
      %v843 = vrot.slane %v813, 2
      %v844 = vrot.slane %v814, 2
      %v845 = vsel %vm659, %v843, %v844
      %v846 = vrot.slane %v815, 2
      %v847 = vsel %vm659, %v844, %v846
      %848 = vrot.lane.b32.xlu0 %v830, 126
      %v849 = vpop.permute.xlu0 %848
      %850 = vrot.lane.b32.xlu0 %v832, 126
      %v851 = vpop.permute.xlu0 %850
      %852 = vrot.lane.b32.xlu0 %v835, 126
      %v853 = vpop.permute.xlu0 %852
      %854 = vrot.lane.b32.xlu0 %v837, 126
      %v855 = vpop.permute.xlu0 %854
      %856 = vrot.lane.b32.xlu0 %v840, 126
      %v857 = vpop.permute.xlu0 %856
      %858 = vrot.lane.b32.xlu0 %v842, 126
      %v859 = vpop.permute.xlu0 %858
      %860 = vrot.lane.b32.xlu0 %v845, 126
      %v861 = vpop.permute.xlu0 %860
      %862 = vrot.lane.b32.xlu0 %v847, 126
      %v863 = vpop.permute.xlu0 %862
      %v872 = vadd.f32 %v780, %v849
      %v873 = vadd.f32 %v781, %v851
      %v874 = vadd.f32 %v782, %v853
      %v875 = vadd.f32 %v783, %v855
      %v876 = vadd.f32 %v784, %v857
      %v877 = vadd.f32 %v785, %v859
      %v878 = vadd.f32 %v786, %v861
      %v879 = vadd.f32 %v787, %v863
      %880 = vset.pattern.permute.xlu0 9
      %881 = vperm.xlu0 %880, %v185
      %v882 = vpop.permute.xlu0 %881
      %884 = vset.pattern.permute.xlu0 9
      %885 = vperm.xlu0 %884, %v189
      %v886 = vpop.permute.xlu0 %885
      %888 = vset.pattern.permute.xlu0 9
      %889 = vperm.xlu0 %888, %v193
      %v890 = vpop.permute.xlu0 %889
      %892 = vset.pattern.permute.xlu0 9
      %893 = vperm.xlu0 %892, %v197
      %v894 = vpop.permute.xlu0 %893
      %v896 = vadd.f32 %v872, %v882
      %v897 = vadd.f32 %v873, %v882
      %v898 = vadd.f32 %v874, %v886
      %v899 = vadd.f32 %v875, %v886
      %v900 = vadd.f32 %v876, %v890
      %v901 = vadd.f32 %v877, %v890
      %v902 = vadd.f32 %v878, %v894
      %v903 = vadd.f32 %v879, %v894
      %vm904 = vcmask 130048
      %905 = vst.msk [vmem:[%s143] sm:$0xff] %vm904, %v896
      %906 = vst.msk [vmem:[%s143 + $0x8] sm:$0xff] %vm904, %v897
      %907 = vst.msk [vmem:[%s143 + $0x10] sm:$0xff] %vm904, %v898
      %908 = vst.msk [vmem:[%s143 + $0x18] sm:$0xff] %vm904, %v899
      %909 = vst.msk [vmem:[%s143 + $0x20] sm:$0xff] %vm904, %v900
      %910 = vst.msk [vmem:[%s143 + $0x28] sm:$0xff] %vm904, %v901
      %911 = vst.msk [vmem:[%s143 + $0x30] sm:$0xff] %vm904, %v902
      %912 = vst.msk [vmem:[%s143 + $0x38] sm:$0xff] %vm904, %v903
      %p913 = scmp.lt.s32.totalorder %s13, 1
      %s914 = scalar_select %p913, %s13, 1
      %s915 = smul.addr %s914, 8
      %s916 = smul.addr %s915, 8
      %s917 = scalar_lea.vmem %s2, %s916
      // Predicated region
      $region29: #{_lambda_.2} parent=27 // pred_check
        %p918 = pneg %p78
      $region30: #{_lambda_.2} parent=27 // pred_check_branch
        %920 = sbr.rel (%p918) target = $region32
      $region31: #{_lambda_.2} parent=27 // pred_region
        _
      $region32: #{_lambda_.2} parent=27 // pred_fallthru
        _
    $region28: #{_lambda_.2} parent=5 // pred_fallthru
      _
    %p921 = scmp.le.s32.totalorder 2, %s8
    // Predicated region
    $region33: #{_lambda_.2} parent=5 // pred_check
      %p922 = pneg %p921
    $region34: #{_lambda_.2} parent=5 // pred_check_branch
      %924 = sbr.rel (%p922) target = $region36
    $region35: #{_lambda_.2} parent=5 // pred_region
      %s925 = ssub.s32 %s8, 2
      // Predicated region
      $region37: #{_lambda_.2} parent=35 // pred_check
        %p926 = pneg %p84
      $region38: #{_lambda_.2} parent=35 // pred_check_branch
        %928 = sbr.rel (%p926) target = $region40
      $region39: #{_lambda_.2} parent=35 // pred_region
        %p929 = scmp.lt.s32.totalorder %s14, 1
        %s930 = scalar_select %p929, %s14, 1
        %s931 = smul.addr %s930, 8
        %s932 = smul.addr %s931, 8
        %s933 = scalar_lea.vmem %s2, %s932
      $region40: #{_lambda_.2} parent=35 // pred_fallthru
        _
    $region36: #{_lambda_.2} parent=5 // pred_fallthru
      _
  $region6: #{_lambda_.2} parent=0 // loop_footer
    %s12 = sadd.s32 1, %s8
  $region7: #{_lambda_.2} parent=0 // loop_footer_branch
    %7 = sbr.rel target = $region3
  $region8: #{_lambda_.2} parent=0 // loop_exit
    _

// kernel: _lambda_.3
$region0: #{_lambda_.3}
  #allocation0 [shape = 'u32[]', space=smem, size = 0x4, offset = 0x4, fixed_abs, tag = 'smem constant byte address 0x4 - core index']
  #allocation1 [shape = 'u32[144,128]{1,0:T(1,128)}', space=vmem, size = 0x12000, scoped, tag = 'internal scratch']
  %s0 = inlined_call_operand.vmem [shape: f32[2,4,256], index: 0, kind: input, shape index: {}]
  %s1 = inlined_call_operand.vmem [shape: f32[2,4,256], index: 1, kind: input, shape index: {}]
  %s2 = inlined_call_operand.vmem [shape: f32[4,2], index: 2, kind: input, shape index: {}]
  %s3 = inlined_call_operand.vmem [shape: f32[8,4], index: 3, kind: input, shape index: {}]
  %s4 = inlined_call_operand.vmem [shape: f32[8,8], index: 4, kind: input, shape index: {}]
  %s5 = inlined_call_operand.vmem [shape: f32[8,4], index: 5, kind: input, shape index: {}]
  %s6 = inlined_call_operand.vmem [shape: f32[8,4], index: 6, kind: input, shape index: {}]
  %s7 = inlined_call_operand.vmem [shape: f32[2,8,256], index: 7, kind: output, shape index: {}]
  %s8 = sld [smem:[#allocation0]]
  $region61: #{_lambda_.3} parent=0
    _
  %s10 = ssub.s32 1, %s8
  %s11 = scalar_select 0, %s10, %s8
  loop: start=0, step=1, limit=4
  $region2: #{_lambda_.3} parent=0 // loop_pre_header
    _
  $region3: #{_lambda_.3} parent=0 // loop_header
    %s13 = sphi 0, %s17
    %p14 = scmp.ge.s32.totalorder %s13, 4
    %s20 = sphi 0, %s32
    %s21 = sphi 0, %s28
    %s22 = sphi 0, %s20
    %s23 = sphi 0, %s21
    %s24 = sphi 0, %s22
    %s25 = sphi 0, %s23
    %s37 = sphi 0, %s39
    %s40 = sphi 0, %s37
    %s41 = sphi 0, %s40
    %s57 = sphi 0, %s41
    %s65 = sphi 0, %s67
    %s68 = sphi 0, %s65
    %s69 = sphi 0, %s68
    %s85 = sphi 0, %s69
    %s89 = sphi 0, %s89
    %s91 = sphi 0, %s89
    %s92 = sphi 0, %s91
    %s106 = sphi 0, %s92
    %s110 = sphi 0, %s110
    %s112 = sphi 0, %s110
    %s113 = sphi 0, %s112
    %s127 = sphi 0, %s113
    %s131 = sphi 0, %s131
    %s133 = sphi 0, %s131
    %s134 = sphi 0, %s133
    %s148 = sphi 0, %s134
    %s152 = sphi 0, %s152
    %s154 = sphi 0, %s152
    %s155 = sphi 0, %s154
    %s169 = sphi 0, %s155
    %s173 = sphi 0, %s173
    %s175 = sphi 0, %s173
    %s176 = sphi 0, %s175
    %s190 = sphi 0, %s176
    %s198 = sphi 0, %s200
    %s201 = sphi 0, %s198
    %s202 = sphi 0, %s201
    %s218 = sphi 0, %s202
  $region4: #{_lambda_.3} parent=0 // loop_header_branch
    %16 = sbr.rel (%p14) target = $region8
  $region5: #{_lambda_.3} parent=0 // loop_body
    %s18 = ssub.s32 %s13, 1
    %s19 = ssub.s32 %s13, 2
    %s26 = sadd.s32 1, %s21
    %p27 = scmp.ge.s32.totalorder %s26, 1
    %s28 = scalar_select %p27, 0, %s26
    %s29 = sadd.s32 1, %s20
    %s30 = scalar_select %p27, %s29, %s20
    %p31 = scmp.ge.s32.totalorder %s30, 2
    %s32 = scalar_select %p31, 0, %s30
    %s33 = ssub.s32 %s20, %s32
    %s34 = ssub.s32 %s21, %s28
    %s35 = sor.u32 %s33, %s34
    %p36 = scmp.eq.s32.totalorder %s35, 0
    %s38 = sadd.s32 %s37, 1
    %s39 = scalar_select %p36, %s37, %s38
    %p42 = pneg %p36
    %p43 = scmp.eq.s32.totalorder %s13, 1
    %p44 = por %p42, %p43
    %p45 = scmp.ne.s32.totalorder %s37, %s40
    %p46 = scmp.eq.s32.totalorder %s13, 0
    %p47 = por %p45, %p46
    %p48 = scmp.ne.s32.totalorder %s37, %s40
    %p49 = scmp.eq.s32.totalorder %s18, 1
    %p50 = por %p48, %p49
    %p51 = scmp.ne.s32.totalorder %s40, %s41
    %p52 = scmp.eq.s32.totalorder %s18, 0
    %p53 = por %p51, %p52
    %p54 = scmp.ne.s32.totalorder %s40, %s41
    %p55 = scmp.eq.s32.totalorder %s19, 1
    %p56 = por %p54, %p55
    %p58 = scmp.ne.s32.totalorder %s41, %s57
    %p59 = scmp.eq.s32.totalorder %s19, 0
    %p60 = por %p58, %p59
    %s61 = ssub.s32 %s20, %s32
    %s62 = ssub.s32 %s21, %s28
    %s63 = sor.u32 %s61, %s62
    %p64 = scmp.eq.s32.totalorder %s63, 0
    %s66 = sadd.s32 %s65, 1
    %s67 = scalar_select %p64, %s65, %s66
    %p70 = pneg %p64
    %p71 = scmp.eq.s32.totalorder %s13, 1
    %p72 = por %p70, %p71
    %p73 = scmp.ne.s32.totalorder %s65, %s68
    %p74 = scmp.eq.s32.totalorder %s13, 0
    %p75 = por %p73, %p74
    %p76 = scmp.ne.s32.totalorder %s65, %s68
    %p77 = scmp.eq.s32.totalorder %s18, 1
    %p78 = por %p76, %p77
    %p79 = scmp.ne.s32.totalorder %s68, %s69
    %p80 = scmp.eq.s32.totalorder %s18, 0
    %p81 = por %p79, %p80
    %p82 = scmp.ne.s32.totalorder %s68, %s69
    %p83 = scmp.eq.s32.totalorder %s19, 1
    %p84 = por %p82, %p83
    %p86 = scmp.ne.s32.totalorder %s69, %s85
    %p87 = scmp.eq.s32.totalorder %s19, 0
    %p88 = por %p86, %p87
    %s90 = sadd.s32 %s89, 1
    %p93 = scmp.eq.s32.totalorder %s13, 1
    %p94 = scmp.ne.s32.totalorder %s89, %s91
    %p95 = scmp.eq.s32.totalorder %s13, 0
    %p96 = por %p94, %p95
    %p97 = scmp.ne.s32.totalorder %s89, %s91
    %p98 = scmp.eq.s32.totalorder %s18, 1
    %p99 = por %p97, %p98
    %p100 = scmp.ne.s32.totalorder %s91, %s92
    %p101 = scmp.eq.s32.totalorder %s18, 0
    %p102 = por %p100, %p101
    %p103 = scmp.ne.s32.totalorder %s91, %s92
    %p104 = scmp.eq.s32.totalorder %s19, 1
    %p105 = por %p103, %p104
    %p107 = scmp.ne.s32.totalorder %s92, %s106
    %p108 = scmp.eq.s32.totalorder %s19, 0
    %p109 = por %p107, %p108
    %s111 = sadd.s32 %s110, 1
    %p114 = scmp.eq.s32.totalorder %s13, 1
    %p115 = scmp.ne.s32.totalorder %s110, %s112
    %p116 = scmp.eq.s32.totalorder %s13, 0
    %p117 = por %p115, %p116
    %p118 = scmp.ne.s32.totalorder %s110, %s112
    %p119 = scmp.eq.s32.totalorder %s18, 1
    %p120 = por %p118, %p119
    %p121 = scmp.ne.s32.totalorder %s112, %s113
    %p122 = scmp.eq.s32.totalorder %s18, 0
    %p123 = por %p121, %p122
    %p124 = scmp.ne.s32.totalorder %s112, %s113
    %p125 = scmp.eq.s32.totalorder %s19, 1
    %p126 = por %p124, %p125
    %p128 = scmp.ne.s32.totalorder %s113, %s127
    %p129 = scmp.eq.s32.totalorder %s19, 0
    %p130 = por %p128, %p129
    %s132 = sadd.s32 %s131, 1
    %p135 = scmp.eq.s32.totalorder %s13, 1
    %p136 = scmp.ne.s32.totalorder %s131, %s133
    %p137 = scmp.eq.s32.totalorder %s13, 0
    %p138 = por %p136, %p137
    %p139 = scmp.ne.s32.totalorder %s131, %s133
    %p140 = scmp.eq.s32.totalorder %s18, 1
    %p141 = por %p139, %p140
    %p142 = scmp.ne.s32.totalorder %s133, %s134
    %p143 = scmp.eq.s32.totalorder %s18, 0
    %p144 = por %p142, %p143
    %p145 = scmp.ne.s32.totalorder %s133, %s134
    %p146 = scmp.eq.s32.totalorder %s19, 1
    %p147 = por %p145, %p146
    %p149 = scmp.ne.s32.totalorder %s134, %s148
    %p150 = scmp.eq.s32.totalorder %s19, 0
    %p151 = por %p149, %p150
    %s153 = sadd.s32 %s152, 1
    %p156 = scmp.eq.s32.totalorder %s13, 1
    %p157 = scmp.ne.s32.totalorder %s152, %s154
    %p158 = scmp.eq.s32.totalorder %s13, 0
    %p159 = por %p157, %p158
    %p160 = scmp.ne.s32.totalorder %s152, %s154
    %p161 = scmp.eq.s32.totalorder %s18, 1
    %p162 = por %p160, %p161
    %p163 = scmp.ne.s32.totalorder %s154, %s155
    %p164 = scmp.eq.s32.totalorder %s18, 0
    %p165 = por %p163, %p164
    %p166 = scmp.ne.s32.totalorder %s154, %s155
    %p167 = scmp.eq.s32.totalorder %s19, 1
    %p168 = por %p166, %p167
    %p170 = scmp.ne.s32.totalorder %s155, %s169
    %p171 = scmp.eq.s32.totalorder %s19, 0
    %p172 = por %p170, %p171
    %s174 = sadd.s32 %s173, 1
    %p177 = scmp.eq.s32.totalorder %s13, 1
    %p178 = scmp.ne.s32.totalorder %s173, %s175
    %p179 = scmp.eq.s32.totalorder %s13, 0
    %p180 = por %p178, %p179
    %p181 = scmp.ne.s32.totalorder %s173, %s175
    %p182 = scmp.eq.s32.totalorder %s18, 1
    %p183 = por %p181, %p182
    %p184 = scmp.ne.s32.totalorder %s175, %s176
    %p185 = scmp.eq.s32.totalorder %s18, 0
    %p186 = por %p184, %p185
    %p187 = scmp.ne.s32.totalorder %s175, %s176
    %p188 = scmp.eq.s32.totalorder %s19, 1
    %p189 = por %p187, %p188
    %p191 = scmp.ne.s32.totalorder %s176, %s190
    %p192 = scmp.eq.s32.totalorder %s19, 0
    %p193 = por %p191, %p192
    %s194 = ssub.s32 %s20, %s32
    %s195 = ssub.s32 %s21, %s28
    %s196 = sor.u32 %s194, %s195
    %p197 = scmp.eq.s32.totalorder %s196, 0
    %s199 = sadd.s32 %s198, 1
    %s200 = scalar_select %p197, %s198, %s199
    %p203 = pneg %p197
    %p204 = scmp.eq.s32.totalorder %s13, 1
    %p205 = por %p203, %p204
    %p206 = scmp.ne.s32.totalorder %s198, %s201
    %p207 = scmp.eq.s32.totalorder %s13, 0
    %p208 = por %p206, %p207
    %p209 = scmp.ne.s32.totalorder %s198, %s201
    %p210 = scmp.eq.s32.totalorder %s18, 1
    %p211 = por %p209, %p210
    %p212 = scmp.ne.s32.totalorder %s201, %s202
    %p213 = scmp.eq.s32.totalorder %s18, 0
    %p214 = por %p212, %p213
    %p215 = scmp.ne.s32.totalorder %s201, %s202
    %p216 = scmp.eq.s32.totalorder %s19, 1
    %p217 = por %p215, %p216
    %p219 = scmp.ne.s32.totalorder %s202, %s218
    %p220 = scmp.eq.s32.totalorder %s19, 0
    %p221 = por %p219, %p220
    %p222 = scmp.le.s32.totalorder 1, %s13
    %p223 = scmp.lt.s32.totalorder %s13, 3
    %p224 = pnand %p222, %p223
    %p225 = pneg %p224
    // Predicated region
    $region9: #{_lambda_.3} parent=5 // pred_check
      _
    $region10: #{_lambda_.3} parent=5 // pred_check_branch
      %227 = sbr.rel (%p224) target = $region12
    $region11: #{_lambda_.3} parent=5 // pred_region
      %s228 = ssub.s32 %s13, 1
      // Predicated region
      $region13: #{_lambda_.3} parent=11 // pred_check
        %p229 = pneg %p102
      $region14: #{_lambda_.3} parent=11 // pred_check_branch
        %231 = sbr.rel (%p229) target = $region16
      $region15: #{_lambda_.3} parent=11 // pred_region
        _
      $region16: #{_lambda_.3} parent=11 // pred_fallthru
        _
      // Predicated region
      $region17: #{_lambda_.3} parent=11 // pred_check
        %p232 = pneg %p123
      $region18: #{_lambda_.3} parent=11 // pred_check_branch
        %234 = sbr.rel (%p232) target = $region20
      $region19: #{_lambda_.3} parent=11 // pred_region
        _
      $region20: #{_lambda_.3} parent=11 // pred_fallthru
        _
      // Predicated region
      $region21: #{_lambda_.3} parent=11 // pred_check
        %p235 = pneg %p144
      $region22: #{_lambda_.3} parent=11 // pred_check_branch
        %237 = sbr.rel (%p235) target = $region24
      $region23: #{_lambda_.3} parent=11 // pred_region
        _
      $region24: #{_lambda_.3} parent=11 // pred_fallthru
        _
      // Predicated region
      $region25: #{_lambda_.3} parent=11 // pred_check
        %p238 = pneg %p165
      $region26: #{_lambda_.3} parent=11 // pred_check_branch
        %240 = sbr.rel (%p238) target = $region28
      $region27: #{_lambda_.3} parent=11 // pred_region
        _
      $region28: #{_lambda_.3} parent=11 // pred_fallthru
        _
      // Predicated region
      $region29: #{_lambda_.3} parent=11 // pred_check
        %p241 = pneg %p186
      $region30: #{_lambda_.3} parent=11 // pred_check_branch
        %243 = sbr.rel (%p241) target = $region32
      $region31: #{_lambda_.3} parent=11 // pred_region
        _
      $region32: #{_lambda_.3} parent=11 // pred_fallthru
        _
    $region12: #{_lambda_.3} parent=5 // pred_fallthru
      _
    %p244 = scmp.lt.s32.totalorder %s13, 2
    // Predicated region
    $region33: #{_lambda_.3} parent=5 // pred_check
      %p245 = pneg %p244
    $region34: #{_lambda_.3} parent=5 // pred_check_branch
      %247 = sbr.rel (%p245) target = $region36
    $region35: #{_lambda_.3} parent=5 // pred_region
      // Predicated region
      $region37: #{_lambda_.3} parent=35 // pred_check
        %p248 = pneg %p47
      $region38: #{_lambda_.3} parent=35 // pred_check_branch
        %250 = sbr.rel (%p248) target = $region40
      $region39: #{_lambda_.3} parent=35 // pred_region
        %s251 = smul.u32 2, %s21
        %p252 = scmp.lt.s32.totalorder %s20, 1
        %s253 = scalar_select %p252, %s20, 1
        %p254 = scmp.lt.s32.totalorder %s251, 1
        %s255 = scalar_select %p254, %s251, 1
        %s256 = smul.addr %s253, 2
        %s257 = sadd.s32 %s255, %s256
        %s258 = smul.addr %s257, 4
        %s259 = scalar_lea.vmem %s0, %s258
        %s260 = smul.u32 2, %s21
      $region40: #{_lambda_.3} parent=35 // pred_fallthru
        _
      // Predicated region
      $region41: #{_lambda_.3} parent=35 // pred_check
        %p261 = pneg %p75
      $region42: #{_lambda_.3} parent=35 // pred_check_branch
        %263 = sbr.rel (%p261) target = $region44
      $region43: #{_lambda_.3} parent=35 // pred_region
        %s264 = smul.u32 2, %s21
        %p265 = scmp.lt.s32.totalorder %s20, 1
        %s266 = scalar_select %p265, %s20, 1
        %p267 = scmp.lt.s32.totalorder %s264, 1
        %s268 = scalar_select %p267, %s264, 1
        %s269 = smul.addr %s266, 2
        %s270 = sadd.s32 %s268, %s269
        %s271 = smul.addr %s270, 4
        %s272 = scalar_lea.vmem %s1, %s271
        %s273 = smul.u32 2, %s21
      $region44: #{_lambda_.3} parent=35 // pred_fallthru
        _
    $region36: #{_lambda_.3} parent=5 // pred_fallthru
      _
    %p274 = scmp.le.s32.totalorder 1, %s13
    %p275 = scmp.lt.s32.totalorder %s13, 3
    %p276 = pnand %p274, %p275
    %p277 = pneg %p276
    // Predicated region
    $region45: #{_lambda_.3} parent=5 // pred_check
      _
    $region46: #{_lambda_.3} parent=5 // pred_check_branch
      %279 = sbr.rel (%p276) target = $region48
    $region47: #{_lambda_.3} parent=5 // pred_region
      %s280 = ssub.s32 %s13, 1
      %s281 = smul.u32 2, %s23
      %p282 = scmp.lt.s32.totalorder %s22, 1
      %s283 = scalar_select %p282, %s22, 1
      %p284 = scmp.lt.s32.totalorder %s281, 1
      %s285 = scalar_select %p284, %s281, 1
      %s286 = smul.addr %s283, 2
      %s287 = sadd.s32 %s285, %s286
      %s288 = smul.addr %s287, 4
      %s289 = scalar_lea.vmem %s0, %s288
      %p290 = pneg %p53
      %p291 = pneg %p50
      %s292 = smul.u32 2, %s23
      %p293 = scmp.lt.s32.totalorder %s22, 1
      %s294 = scalar_select %p293, %s22, 1
      %p295 = scmp.lt.s32.totalorder %s292, 1
      %s296 = scalar_select %p295, %s292, 1
      %s297 = smul.addr %s294, 2
      %s298 = sadd.s32 %s296, %s297
      %s299 = smul.addr %s298, 4
      %s300 = scalar_lea.vmem %s1, %s299
      %p301 = pneg %p81
      %p302 = pneg %p78
      %p303 = pneg %p102
      %p304 = pneg %p99
      %p305 = pneg %p123
      %p306 = pneg %p120
      %p307 = pneg %p144
      %p308 = pneg %p141
      %p309 = pneg %p165
      %p310 = pneg %p162
      %p311 = pneg %p186
      %p312 = pneg %p183
      %p313 = pneg %p214
      %p314 = pneg %p211
      %s315 = smul.u32 2, %s23
      %p316 = scmp.lt.s32.totalorder %s22, 1
      %s317 = scalar_select %p316, %s22, 1
      %p318 = scmp.lt.s32.totalorder %s315, 1
      %s319 = scalar_select %p318, %s315, 1
      %s320 = smul.addr %s317, 2
      %s321 = sadd.s32 %s319, %s320
      %s322 = smul.addr %s321, 8
      %s323 = scalar_lea.vmem %s7, %s322
      %s324 = smul.u32 2, %s23
      %p325 = scmp.lt.s32.totalorder %s22, 1
      %s326 = scalar_select %p325, %s22, 1
      %p327 = scmp.lt.s32.totalorder %s324, 1
      %s328 = scalar_select %p327, %s324, 1
      %s329 = smul.addr %s326, 2
      %s330 = sadd.s32 %s328, %s329
      %s331 = smul.addr %s330, 4
      %s332 = scalar_lea.vmem %s0, %s331
      %s333 = smul.u32 2, %s23
      %s334 = smul.u32 2, %s23
      %p335 = scmp.lt.s32.totalorder %s22, 1
      %s336 = scalar_select %p335, %s22, 1
      %p337 = scmp.lt.s32.totalorder %s334, 1
      %s338 = scalar_select %p337, %s334, 1
      %s339 = smul.addr %s336, 2
      %s340 = sadd.s32 %s338, %s339
      %s341 = smul.addr %s340, 4
      %s342 = scalar_lea.vmem %s1, %s341
      %s343 = smul.u32 2, %s23
      %s344 = smul.u32 2, %s23
      %p345 = scmp.lt.s32.totalorder %s22, 1
      %s346 = scalar_select %p345, %s22, 1
      %p347 = scmp.lt.s32.totalorder %s344, 1
      %s348 = scalar_select %p347, %s344, 1
      %s349 = smul.addr %s346, 2
      %s350 = sadd.s32 %s348, %s349
      %s351 = smul.addr %s350, 8
      %s352 = scalar_lea.vmem %s7, %s351
      %s353 = smul.u32 2, %s23
      %v354 = vld [vmem:[%s332] sm:$0xff]
      %v355 = vld [vmem:[%s342] sm:$0xff]
      %v357 = vcombine.high %v354, %v354
      %vm359 = vcmask 1043456
      %v360 = vsel %vm359, %v354, 0.0
      %v361 = vrot.slane %v360, 4
      %v362 = vadd.f32 %v360, %v361
      %v363 = vrot.slane %v362, 2
      %v364 = vadd.f32 %v362, %v363
      %v365 = vrot.slane %v364, 1
      %v366 = vadd.f32 %v364, %v365
      %v367 = vsel %vm359, %v357, 0.0
      %v368 = vrot.slane %v367, 4
      %v369 = vadd.f32 %v367, %v368
      %v370 = vrot.slane %v369, 2
      %v371 = vadd.f32 %v369, %v370
      %v372 = vrot.slane %v371, 1
      %v373 = vadd.f32 %v371, %v372
      %v374 = vrcp.pop 4.0
      %v375 = vmul.f32 %v366, %v374
      %v376 = vmul.f32 %v373, %v374
      %v379 = vcombine.low %v375, %v376
      %v381 = vsub.f32 %v354, %v379
      %v382 = vmul.f32 %v381, %v381
      %v384 = vcombine.high %v382, %v382
      %v386 = vsel %vm359, %v382, 0.0
      %v387 = vrot.slane %v386, 4
      %v388 = vadd.f32 %v386, %v387
      %v389 = vrot.slane %v388, 2
      %v390 = vadd.f32 %v388, %v389
      %v391 = vrot.slane %v390, 1
      %v392 = vadd.f32 %v390, %v391
      %v393 = vsel %vm359, %v384, 0.0
      %v394 = vrot.slane %v393, 4
      %v395 = vadd.f32 %v393, %v394
      %v396 = vrot.slane %v395, 2
      %v397 = vadd.f32 %v395, %v396
      %v398 = vrot.slane %v397, 1
      %v399 = vadd.f32 %v397, %v398
      %v400 = vmul.f32 %v392, %v374
      %v401 = vmul.f32 %v399, %v374
      %v402 = vadd.f32 %v400, 1e-06
      %v403 = vadd.f32 %v401, 1e-06
      %v404 = vrsqrt.pop %v402
      %v405 = vrsqrt.pop %v403
      %v406 = vld [vmem:[%s2] sm:$0xf]
      %408 = vset.pattern.permute.xlu0 0
      %409 = vperm.xlu0 %408, %v406
      %v410 = vpop.permute.xlu0 %409
      %v412 = vmul.f32 %v410, %v404
      %v413 = vmul.f32 %v410, %v405
      %v416 = vcombine.low %v412, %v413
      %v418 = vmul.f32 %v381, %v416
      %419 = vset.pattern.permute.xlu0 1
      %420 = vperm.xlu0 %419, %v406
      %v421 = vpop.permute.xlu0 %420
      %v423 = vunpack.c.l.s4 839922192
      %v424 = vunpack.c.0.s8 %v423
      %v425 = vlaneseq
      %v426 = vshrl.u32 %v425, 7
      %v427 = vsub.s32 %v424, %v426
      %v428 = vrot.slane %v421, %v427
      %v430 = vadd.f32 %v418, %v428
      %v431 = vld [vmem:[%s6] sm:$0xff]
      %v432 = vld [vmem:[%s3] sm:$0xff]
      %434 = vset.pattern.permute.xlu0 0
      %435 = vperm.xlu0 %434, %v431
      %v436 = vpop.permute.xlu0 %435
      %v439 = vcombine.high %v430, %v430
      %vm440 = vcmask 31744
      %v442 = vsel %vm440, %v432, 0
      %v444 = vsel %vm359, %v430, 0
      %v446 = vsel %vm359, %v439, 0
      %448 = vmatprep.subr.mxu0 0.0
      %449 = vmatpush1.msra.mxu0 0.0
      %450 = vmatprep.subr.mxu0 0.0
      %451 = vmatpush1.msra.mxu0 0.0
      %452 = vmatprep.subr.mxu0 0.0
      %453 = vmatpush1.msra.mxu0 0.0
      %454 = vmatprep.subr.mxu0 0.0
      %455 = vmatpush1.msra.mxu0 0.0
      %456 = vmatprep.subr.mxu0 0.0
      %457 = vmatpush1.msra.mxu0 0.0
      %458 = vmatprep.subr.mxu0 0.0
      %459 = vmatpush1.msra.mxu0 0.0
      %460 = vmatprep.subr.mxu0 0.0
      %461 = vmatpush1.msra.mxu0 0.0
      %462 = vmatprep.subr.mxu0 0.0
      %463 = vmatpush1.msra.mxu0 0.0
      %464 = vmatprep.subr.mxu0 0.0
      %465 = vmatpush1.msra.mxu0 0.0
      %466 = vmatprep.subr.mxu0 0.0
      %467 = vmatpush1.msra.mxu0 0.0
      %468 = vmatprep.subr.mxu0 0.0
      %469 = vmatpush1.msra.mxu0 0.0
      %470 = vmatprep.subr.mxu0 0.0
      %471 = vmatpush1.msra.mxu0 0.0
      %472 = vmatprep.subr.mxu0 0.0
      %473 = vmatpush1.msra.mxu0 0.0
      %474 = vmatprep.subr.mxu0 0.0
      %475 = vmatpush1.msra.mxu0 0.0
      %476 = vmatprep.subr.mxu0 0.0
      %477 = vmatpush1.msra.mxu0 0.0
      %478 = vmatprep.subr.mxu0 %v446
      %479 = vmatpush1.msra.mxu0 %v444
      %480 = vmatprep.subr.mxu0 0.0
      %481 = vmatpush2.msra.mxu0 0.0
      %482 = vmatprep.subr.mxu0 0.0
      %483 = vmatpush2.msra.mxu0 0.0
      %484 = vmatprep.subr.mxu0 0.0
      %485 = vmatpush2.msra.mxu0 0.0
      %486 = vmatprep.subr.mxu0 0.0
      %487 = vmatpush2.msra.mxu0 0.0
      %488 = vmatprep.subr.mxu0 0.0
      %489 = vmatpush2.msra.mxu0 0.0
      %490 = vmatprep.subr.mxu0 0.0
      %491 = vmatpush2.msra.mxu0 0.0
      %492 = vmatprep.subr.mxu0 0.0
      %493 = vmatpush2.msra.mxu0 0.0
      %494 = vmatprep.subr.mxu0 0.0
      %495 = vmatpush2.msra.mxu0 0.0
      %496 = vmatprep.subr.mxu0 0.0
      %497 = vmatpush2.msra.mxu0 0.0
      %498 = vmatprep.subr.mxu0 0.0
      %499 = vmatpush2.msra.mxu0 0.0
      %500 = vmatprep.subr.mxu0 0.0
      %501 = vmatpush2.msra.mxu0 0.0
      %502 = vmatprep.subr.mxu0 0.0
      %503 = vmatpush2.msra.mxu0 0.0
      %504 = vmatprep.subr.mxu0 0.0
      %505 = vmatpush2.msra.mxu0 0.0
      %506 = vmatprep.subr.mxu0 0.0
      %507 = vmatpush2.msra.mxu0 0.0
      %508 = vmatprep.subr.mxu0 0.0
      %509 = vmatpush2.msra.mxu0 0.0
      %510 = vmatprep.subr.mxu0 0.0
      %511 = vmatpush2.msra.mxu0 0.0
      %512 = vmatprep.mubr.f32.mxu0 0.0
      %513 = vmatmul.mubr.f32.gmra.mxu0 %v442
      %v514 = vpop.f32.mrf.mxu0
      %v515 = vadd.f32 %v436, %v514
      %v516 = vpop.f32.mrf.mxu0
      %v517 = vadd.f32 %v436, %v516
      %518 = vdwg.mxu0
      %v519 = vmul.f32 %v515, 0.5
      %v520 = vmul.f32 %v517, 0.5
      %v521 = vmul.f32 %v515, 0.044715
      %v522 = vmul.f32 %v517, 0.044715
      %v523 = vmul.f32 %v521, %v515
      %v524 = vmul.f32 %v522, %v517
      %v525 = vmul.f32 %v523, %v515
      %v526 = vmul.f32 %v524, %v517
      %v527 = vadd.f32 %v515, %v525
      %v528 = vadd.f32 %v517, %v526
      %v529 = vmul.f32 %v527, 0.7978846
      %v530 = vmul.f32 %v528, 0.7978846
      %v531 = vtanh.pop %v529
      %v532 = vtanh.pop %v530
      %v533 = vadd.f32 %v531, 1.0
      %v534 = vadd.f32 %v532, 1.0
      %v535 = vmul.f32 %v519, %v533
      %v536 = vmul.f32 %v520, %v534
      %v537 = vld [vmem:[%s4] sm:$0xff]
      %538 = vset.pattern.permute.xlu0 1
      %539 = vperm.xlu0 %538, %v431
      %v540 = vpop.permute.xlu0 %539
      %vm542 = vcmask 64512
      %v544 = vsel %vm542, %v537, 0
      %546 = vmatprep.subr.mxu0 0.0
      %547 = vmatpush1.msra.mxu0 0.0
      %548 = vmatprep.subr.mxu0 0.0
      %549 = vmatpush1.msra.mxu0 0.0
      %550 = vmatprep.subr.mxu0 0.0
      %551 = vmatpush1.msra.mxu0 0.0
      %552 = vmatprep.subr.mxu0 0.0
      %553 = vmatpush1.msra.mxu0 0.0
      %554 = vmatprep.subr.mxu0 0.0
      %555 = vmatpush1.msra.mxu0 0.0
      %556 = vmatprep.subr.mxu0 0.0
      %557 = vmatpush1.msra.mxu0 0.0
      %558 = vmatprep.subr.mxu0 0.0
      %559 = vmatpush1.msra.mxu0 0.0
      %560 = vmatprep.subr.mxu0 0.0
      %561 = vmatpush1.msra.mxu0 0.0
      %562 = vmatprep.subr.mxu0 0.0
      %563 = vmatpush1.msra.mxu0 0.0
      %564 = vmatprep.subr.mxu0 0.0
      %565 = vmatpush1.msra.mxu0 0.0
      %566 = vmatprep.subr.mxu0 0.0
      %567 = vmatpush1.msra.mxu0 0.0
      %568 = vmatprep.subr.mxu0 0.0
      %569 = vmatpush1.msra.mxu0 0.0
      %570 = vmatprep.subr.mxu0 0.0
      %571 = vmatpush1.msra.mxu0 0.0
      %572 = vmatprep.subr.mxu0 0.0
      %573 = vmatpush1.msra.mxu0 0.0
      %574 = vmatprep.subr.mxu0 0.0
      %575 = vmatpush1.msra.mxu0 0.0
      %576 = vmatprep.subr.mxu0 %v536
      %577 = vmatpush1.msra.mxu0 %v535
      %578 = vmatprep.subr.mxu0 0.0
      %579 = vmatpush2.msra.mxu0 0.0
      %580 = vmatprep.subr.mxu0 0.0
      %581 = vmatpush2.msra.mxu0 0.0
      %582 = vmatprep.subr.mxu0 0.0
      %583 = vmatpush2.msra.mxu0 0.0
      %584 = vmatprep.subr.mxu0 0.0
      %585 = vmatpush2.msra.mxu0 0.0
      %586 = vmatprep.subr.mxu0 0.0
      %587 = vmatpush2.msra.mxu0 0.0
      %588 = vmatprep.subr.mxu0 0.0
      %589 = vmatpush2.msra.mxu0 0.0
      %590 = vmatprep.subr.mxu0 0.0
      %591 = vmatpush2.msra.mxu0 0.0
      %592 = vmatprep.subr.mxu0 0.0
      %593 = vmatpush2.msra.mxu0 0.0
      %594 = vmatprep.subr.mxu0 0.0
      %595 = vmatpush2.msra.mxu0 0.0
      %596 = vmatprep.subr.mxu0 0.0
      %597 = vmatpush2.msra.mxu0 0.0
      %598 = vmatprep.subr.mxu0 0.0
      %599 = vmatpush2.msra.mxu0 0.0
      %600 = vmatprep.subr.mxu0 0.0
      %601 = vmatpush2.msra.mxu0 0.0
      %602 = vmatprep.subr.mxu0 0.0
      %603 = vmatpush2.msra.mxu0 0.0
      %604 = vmatprep.subr.mxu0 0.0
      %605 = vmatpush2.msra.mxu0 0.0
      %606 = vmatprep.subr.mxu0 0.0
      %607 = vmatpush2.msra.mxu0 0.0
      %608 = vmatprep.subr.mxu0 0.0
      %609 = vmatpush2.msra.mxu0 0.0
      %610 = vmatprep.mubr.f32.mxu0 0.0
      %611 = vmatmul.mubr.f32.gmra.mxu0 %v544
      %v612 = vpop.f32.mrf.mxu0
      %v613 = vadd.f32 %v540, %v612
      %v614 = vpop.f32.mrf.mxu0
      %v615 = vadd.f32 %v540, %v614
      %616 = vdwg.mxu0
      %617 = vset.pattern.permute.xlu0 2
      %618 = vperm.xlu0 %617, %v431
      %v619 = vpop.permute.xlu0 %618
      %v621 = vmul.f32 %v619, %v613
      %v622 = vmul.f32 %v619, %v615
      %v623 = vld [vmem:[%s5] sm:$0xff]
      %624 = vset.pattern.permute.xlu0 3
      %625 = vperm.xlu0 %624, %v431
      %v626 = vpop.permute.xlu0 %625
      %v629 = vcombine.high %v355, %v355
      %v631 = vsel %vm440, %v623, 0
      %v633 = vsel %vm359, %v355, 0
      %v635 = vsel %vm359, %v629, 0
      %637 = vmatprep.subr.mxu0 0.0
      %638 = vmatpush1.msra.mxu0 0.0
      %639 = vmatprep.subr.mxu0 0.0
      %640 = vmatpush1.msra.mxu0 0.0
      %641 = vmatprep.subr.mxu0 0.0
      %642 = vmatpush1.msra.mxu0 0.0
      %643 = vmatprep.subr.mxu0 0.0
      %644 = vmatpush1.msra.mxu0 0.0
      %645 = vmatprep.subr.mxu0 0.0
      %646 = vmatpush1.msra.mxu0 0.0
      %647 = vmatprep.subr.mxu0 0.0
      %648 = vmatpush1.msra.mxu0 0.0
      %649 = vmatprep.subr.mxu0 0.0
      %650 = vmatpush1.msra.mxu0 0.0
      %651 = vmatprep.subr.mxu0 0.0
      %652 = vmatpush1.msra.mxu0 0.0
      %653 = vmatprep.subr.mxu0 0.0
      %654 = vmatpush1.msra.mxu0 0.0
      %655 = vmatprep.subr.mxu0 0.0
      %656 = vmatpush1.msra.mxu0 0.0
      %657 = vmatprep.subr.mxu0 0.0
      %658 = vmatpush1.msra.mxu0 0.0
      %659 = vmatprep.subr.mxu0 0.0
      %660 = vmatpush1.msra.mxu0 0.0
      %661 = vmatprep.subr.mxu0 0.0
      %662 = vmatpush1.msra.mxu0 0.0
      %663 = vmatprep.subr.mxu0 0.0
      %664 = vmatpush1.msra.mxu0 0.0
      %665 = vmatprep.subr.mxu0 0.0
      %666 = vmatpush1.msra.mxu0 0.0
      %667 = vmatprep.subr.mxu0 %v635
      %668 = vmatpush1.msra.mxu0 %v633
      %669 = vmatprep.subr.mxu0 0.0
      %670 = vmatpush2.msra.mxu0 0.0
      %671 = vmatprep.subr.mxu0 0.0
      %672 = vmatpush2.msra.mxu0 0.0
      %673 = vmatprep.subr.mxu0 0.0
      %674 = vmatpush2.msra.mxu0 0.0
      %675 = vmatprep.subr.mxu0 0.0
      %676 = vmatpush2.msra.mxu0 0.0
      %677 = vmatprep.subr.mxu0 0.0
      %678 = vmatpush2.msra.mxu0 0.0
      %679 = vmatprep.subr.mxu0 0.0
      %680 = vmatpush2.msra.mxu0 0.0
      %681 = vmatprep.subr.mxu0 0.0
      %682 = vmatpush2.msra.mxu0 0.0
      %683 = vmatprep.subr.mxu0 0.0
      %684 = vmatpush2.msra.mxu0 0.0
      %685 = vmatprep.subr.mxu0 0.0
      %686 = vmatpush2.msra.mxu0 0.0
      %687 = vmatprep.subr.mxu0 0.0
      %688 = vmatpush2.msra.mxu0 0.0
      %689 = vmatprep.subr.mxu0 0.0
      %690 = vmatpush2.msra.mxu0 0.0
      %691 = vmatprep.subr.mxu0 0.0
      %692 = vmatpush2.msra.mxu0 0.0
      %693 = vmatprep.subr.mxu0 0.0
      %694 = vmatpush2.msra.mxu0 0.0
      %695 = vmatprep.subr.mxu0 0.0
      %696 = vmatpush2.msra.mxu0 0.0
      %697 = vmatprep.subr.mxu0 0.0
      %698 = vmatpush2.msra.mxu0 0.0
      %699 = vmatprep.subr.mxu0 0.0
      %700 = vmatpush2.msra.mxu0 0.0
      %701 = vmatprep.mubr.f32.mxu0 0.0
      %702 = vmatmul.mubr.f32.gmra.mxu0 %v631
      %v703 = vpop.f32.mrf.mxu0
      %v704 = vadd.f32 %v626, %v703
      %v705 = vpop.f32.mrf.mxu0
      %v706 = vadd.f32 %v626, %v705
      %707 = vdwg.mxu0
      %v708 = vadd.f32 %v621, %v704
      %v709 = vadd.f32 %v622, %v706
      %710 = vst [vmem:[%s352] sm:$0xff] %v708
      %711 = vst [vmem:[%s352 + $0x8] sm:$0xff] %v709
      %s712 = smul.u32 2, %s23
      %p713 = scmp.lt.s32.totalorder %s22, 1
      %s714 = scalar_select %p713, %s22, 1
      %p715 = scmp.lt.s32.totalorder %s712, 1
      %s716 = scalar_select %p715, %s712, 1
      %s717 = smul.addr %s714, 2
      %s718 = sadd.s32 %s716, %s717
      %s719 = smul.addr %s718, 8
      %s720 = scalar_lea.vmem %s7, %s719
      // Predicated region
      $region49: #{_lambda_.3} parent=47 // pred_check
        %p721 = pneg %p211
      $region50: #{_lambda_.3} parent=47 // pred_check_branch
        %723 = sbr.rel (%p721) target = $region52
      $region51: #{_lambda_.3} parent=47 // pred_region
        %s724 = smul.u32 2, %s23
      $region52: #{_lambda_.3} parent=47 // pred_fallthru
        _
    $region48: #{_lambda_.3} parent=5 // pred_fallthru
      _
    %p725 = scmp.le.s32.totalorder 2, %s13
    // Predicated region
    $region53: #{_lambda_.3} parent=5 // pred_check
      %p726 = pneg %p725
    $region54: #{_lambda_.3} parent=5 // pred_check_branch
      %728 = sbr.rel (%p726) target = $region56
    $region55: #{_lambda_.3} parent=5 // pred_region
      %s729 = ssub.s32 %s13, 2
      // Predicated region
      $region57: #{_lambda_.3} parent=55 // pred_check
        %p730 = pneg %p217
      $region58: #{_lambda_.3} parent=55 // pred_check_branch
        %732 = sbr.rel (%p730) target = $region60
      $region59: #{_lambda_.3} parent=55 // pred_region
        %s733 = smul.u32 2, %s25
        %p734 = scmp.lt.s32.totalorder %s24, 1
        %s735 = scalar_select %p734, %s24, 1
        %p736 = scmp.lt.s32.totalorder %s733, 1
        %s737 = scalar_select %p736, %s733, 1
        %s738 = smul.addr %s735, 2
        %s739 = sadd.s32 %s737, %s738
        %s740 = smul.addr %s739, 8
        %s741 = scalar_lea.vmem %s7, %s740
      $region60: #{_lambda_.3} parent=55 // pred_fallthru
        _
    $region56: #{_lambda_.3} parent=5 // pred_fallthru
      _
  $region6: #{_lambda_.3} parent=0 // loop_footer
    %s17 = sadd.s32 1, %s13
  $region7: #{_lambda_.3} parent=0 // loop_footer_branch
    %12 = sbr.rel target = $region3
  $region8: #{_lambda_.3} parent=0 // loop_exit
    _

</llo_original>
